<compile_context>
chip_gen: v7x
topology: tpu7x:2x2x1
jax: 0.10.0
libtpu: 0.0.40
codegen_flags: <defaults>
</compile_context>

<pallas_src>
import functools

import jax
import jax.numpy as jnp
from jax.experimental import pallas as pl
from jax.experimental.pallas import tpu as pltpu


def _round_up(x, m):
    return ((x + m - 1) // m) * m


# ----------------------------------------------------------------------------
# Kernel 1: stem (1x1 conv + swish) with fused spatial avg-pool + LayerNorm
# ----------------------------------------------------------------------------
def _stem_pool_ln_kernel(x_ref, wt_ref, b_ref, g_ref, be_ref, o_ref, acc_ref,
                         *, inv_hw, pad_count, eps):
    """Grid: (num_spatial_tiles,) -- reduction axis ("arbitrary").

    x_ref:   (B, Cin, t_hw)   NCHW-native spatial tile (HW on the lane axis)
    wt_ref:  (hidden, Cin)    1x1-conv weight, pre-transposed at init
    b_ref:   (hidden, 1)      1x1-conv bias
    g_ref/be_ref: (hidden, 1) LayerNorm affine
    o_ref:   (hidden, B) bf16 normalized pooled features (written last step)
    acc_ref: (hidden, B) f32  running spatial sum per batch
    """
    s = pl.program_id(0)

    @pl.when(s == 0)
    def _():
        acc_ref[...] = jnp.zeros_like(acc_ref)

    wt = wt_ref[...]                                    # (hidden, Cin)
    bias = b_ref[...]                                   # (hidden, 1)
    B = x_ref.shape[0]
    hidden = acc_ref.shape[0]

    # Per-batch 1x1 conv on the MXU (K = Cin is tiny; not the bottleneck once
    # tiles are large), swish on the VPU, spatial reduce on the XLU.  All
    # batches are merged into a SINGLE full-tile accumulator update -- no
    # 1-sublane masked read-modify-writes.
    cols = []
    for b in range(B):                                  # B is small & static
        xb = x_ref[b]                                   # (Cin, t_hw)
        y = jnp.dot(wt, xb, preferred_element_type=jnp.float32) + bias
        y = y * jax.nn.sigmoid(y)                       # swish
        cols.append(jnp.sum(y, axis=1, keepdims=True))  # (hidden, 1)

    lane = jax.lax.broadcasted_iota(jnp.int32, (hidden, B), 1)
    delta = jnp.zeros((hidden, B), jnp.float32)
    for b in range(B):
        delta = jnp.where(lane == b, cols[b], delta)
    acc_ref[...] += delta

    @pl.when(s == pl.num_programs(0) - 1)
    def _():
        total = acc_ref[...]                            # (hidden, B)
        if pad_count:                                   # static: undo the
            total = total - pad_count * (bias * jax.nn.sigmoid(bias))
        pooled = total * inv_hw                         # AdaptiveAvgPool2d(1)
        mu = jnp.mean(pooled, axis=0, keepdims=True)    # LayerNorm over hidden
        var = jnp.mean((pooled - mu) ** 2, axis=0, keepdims=True)
        xn = (pooled - mu) * jax.lax.rsqrt(var + eps)
        xn = xn * g_ref[...] + be_ref[...]
        o_ref[...] = xn.astype(o_ref.dtype)             # single bf16 cast here


# ----------------------------------------------------------------------------
# Kernel 2: classifier head -- streaming bf16 matmul over class tiles
# ----------------------------------------------------------------------------
def _head_kernel(xn_ref, w_ref, b_ref, o_ref):
    """xn_ref: (B, hidden) bf16 (resident), w_ref: (hidden, tile_n) bf16
    (streamed), b_ref: (1, tile_n) f32, o_ref: (B, tile_n) f32.

    bf16 x bf16 -> f32 natively on the MXU: no f32 upcast of the streamed
    weight tile (that cast burned VPU slots and a multi-MiB VMEM temp/step).
    """
    out = jnp.dot(xn_ref[...], w_ref[...], preferred_element_type=jnp.float32)
    o_ref[...] = out + b_ref[...]


# ----------------------------------------------------------------------------
# Wrapper
# ----------------------------------------------------------------------------
def bengal_forward(x, params, *, t_hw_max=4096, eps=1e-5):
    """x: (B, Cin, H, W) float32 NCHW.  Returns (B, class_num) f32 logits."""
    B, Cin, H, W = x.shape
    hidden = params["w_stem_t"].shape[0]
    class_num = int(params["class_num"])
    tile_n = int(params["tile_n"])

    # ---- stem + fused avg-pool + LayerNorm --------------------------------
    # NCHW-native: pure reshape (no transpose => no extra HBM pass over x);
    # the long HW axis sits on the 128-lane axis.
    HW = H * W
    HW_pad = _round_up(HW, 128)
    t_hw = min(HW_pad, t_hw_max)          # big tiles: step overhead >> 16 KiB DMA
    HW_pad = _round_up(HW_pad, t_hw)
    pad = HW_pad - HW

    xr = x.reshape(B, Cin, HW)
    if pad:
        xr = jnp.pad(xr, ((0, 0), (0, 0), (0, pad)))  # corrected in-kernel

    xn_t = pl.pallas_call(
        functools.partial(_stem_pool_ln_kernel, inv_hw=1.0 / HW,
                          pad_count=pad, eps=eps),
        out_shape=jax.ShapeDtypeStruct((hidden, B), jnp.bfloat16),
        grid=(HW_pad // t_hw,),
        in_specs=[
            pl.BlockSpec((B, Cin, t_hw), lambda s: (0, 0, s)),
            pl.BlockSpec((hidden, Cin), lambda s: (0, 0)),
            pl.BlockSpec((hidden, 1), lambda s: (0, 0)),
            pl.BlockSpec((hidden, 1), lambda s: (0, 0)),
            pl.BlockSpec((hidden, 1), lambda s: (0, 0)),
        ],
        out_specs=pl.BlockSpec((hidden, B), lambda s: (0, 0)),
        scratch_shapes=[pltpu.VMEM((hidden, B), jnp.float32)],
        compiler_params=pltpu.CompilerParams(
            dimension_semantics=("arbitrary",)),
        # TODO(synk): when the real EfficientNet backbone replaces this stem,
        # add a leading "parallel" axis so both v7x TensorCores are used.
    )(xr, params["w_stem_t"], params["b_stem"], params["gamma"],
      params["beta"])

    xn = xn_t.T                        # (B, hidden) bf16; ~10 KB, negligible

    # ---- head: streaming (bf16) classifier matmul, tiled over classes ------
    w_fc_p = params["w_fc_padded"]     # (hidden, n_pad) bf16, padded at init
    b_fc_p = params["b_fc_padded"]     # (1, n_pad) f32
    n_pad = w_fc_p.shape[1]
    n_tiles = n_pad // tile_n          # 26 tiles at tile_n=512 -> even megacore split

    head = pl.pallas_call(
        _head_kernel,
        out_shape=jax.ShapeDtypeStruct((B, n_pad), jnp.float32),
        grid=(n_tiles,),
        in_specs=[
            pl.BlockSpec((B, hidden), lambda j: (0, 0)),
            pl.BlockSpec((hidden, tile_n), lambda j: (0, j)),  # default 2-deep buffering
            pl.BlockSpec((1, tile_n), lambda j: (0, j)),
        ],
        out_specs=pl.BlockSpec((B, tile_n), lambda j: (0, j)),
        compiler_params=pltpu.CompilerParams(
            dimension_semantics=("parallel",),
            vmem_limit_bytes=32 * 1024 * 1024),   # explicit, fits v5e/v6e/v7x
    )(xn, w_fc_p, b_fc_p)

    return head[:, :class_num]


# ----------------------------------------------------------------------------
# Deterministic parameter init (synthetic; shapes follow BengalModel.__init__)
# ----------------------------------------------------------------------------
def init_params(key, c_in, hidden, class_num, *, tile_n=512):
    k1, k2, k3, k4, k5, k6 = jax.random.split(key, 6)
    w_stem = 0.1 * jax.random.normal(k1, (c_in, hidden), jnp.float32)
    b_stem = 0.1 * jax.random.normal(k4, (hidden, 1), jnp.float32)
    gamma = 1.0 + 0.1 * jax.random.normal(k5, (hidden, 1), jnp.float32)
    beta = 0.05 * jax.random.normal(k6, (hidden, 1), jnp.float32)
    w_fc = (1.0 / jnp.sqrt(hidden)) * jax.random.normal(
        k2, (hidden, class_num), jnp.float32)
    b_fc = 0.01 * jax.random.normal(k3, (1, class_num), jnp.float32)
    # Head is HBM-bound on streaming this weight: store bf16, feed the MXU
    # bf16 directly (f32 accumulate).
    # TODO(synk): on v5e/v6e an int8 weight with per-column scales would halve
    # the HBM stream again; not portable to v7x (fp8-only MXU), so bf16 here.
    w_fc = w_fc.astype(jnp.bfloat16)
    n_pad = _round_up(class_num, tile_n)
    pad = n_pad - class_num
    return {
        # backbone stand-in (1x1 conv), pre-transposed ONCE: (hidden, Cin)
        "w_stem_t": w_stem.T,
        "b_stem": b_stem,
        # nn.LayerNorm(hidden_size); column layout matches (hidden, B) pooled
        "gamma": gamma,
        "beta": beta,
        # nn.Linear(hidden_size, class_num), stored transposed (hidden, class_num)
        "w_fc": w_fc,                                    # bf16, unpadded (reference)
        "b_fc": b_fc,
        # Padded ONCE at init (not per forward call) to 128-multiple tiles.
        "w_fc_padded": jnp.pad(w_fc, ((0, 0), (0, pad))),
        "b_fc_padded": jnp.pad(b_fc, ((0, 0), (0, pad))),
        "class_num": class_num,
        "tile_n": tile_n,
    }


# ----------------------------------------------------------------------------
# Pure-JAX reference for correctness check (mirrors the kernel numerics)
# ----------------------------------------------------------------------------
def reference_forward(x, params, eps=1e-5):
    B, Cin, H, W = x.shape
    xm = jnp.transpose(x.reshape(B, Cin, H * W), (0, 2, 1))   # (B, HW, Cin)
    y = xm @ params["w_stem_t"].T + params["b_stem"].T        # 1x1 conv
    feat = y * jax.nn.sigmoid(y)                              # swish
    pooled = feat.mean(axis=1)                                # AdaptiveAvgPool2d(1)
    mu = pooled.mean(axis=-1, keepdims=True)
    var = ((pooled - mu) ** 2).mean(axis=-1, keepdims=True)
    xn = (pooled - mu) * jax.lax.rsqrt(var + eps)
    xn = xn * params["gamma"].T + params["beta"].T
    xn = xn.astype(jnp.bfloat16)                              # same single cast
    return jnp.dot(xn, params["w_fc"],
                   preferred_element_type=jnp.float32) + params["b_fc"]


if __name__ == "__main__":
    # Small shapes consistent with the forward pass:
    # images (B, Cin, H, W) NCHW -> pooled features (B, hidden) -> logits
    B, C_IN, H, W = 2, 4, 16, 16
    HIDDEN = 128                 # scaled-down hidden_size (module default 2560)
    CLASS_NUM = 168 * 11 * 7     # 12936, as in the module

    key = jax.random.PRNGKey(0)
    kx, kp = jax.random.split(key)
    x = jax.random.normal(kx, (B, C_IN, H, W), jnp.float32)
    params = init_params(kp, C_IN, HIDDEN, CLASS_NUM, tile_n=512)

    out = jax.block_until_ready(bengal_forward(x, params))
    ref = reference_forward(x, params)

    assert out.shape == (B, CLASS_NUM), out.shape
    assert jnp.allclose(out, ref, atol=2e-2, rtol=2e-2), (
        float(jnp.max(jnp.abs(out - ref))))

    print("KERNEL_OK")
</pallas_src>

<mosaic_0001>
module attributes {stable_mosaic.version = 11 : i64} {
  func.func @_stem_pool_ln_kernel(%arg0: i32, %arg1: memref<2x4x256xf32, #tpu.memory_space<vmem>>, %arg2: memref<128x4xf32, #tpu.memory_space<vmem>>, %arg3: memref<128x1xf32, #tpu.memory_space<vmem>>, %arg4: memref<128x1xf32, #tpu.memory_space<vmem>>, %arg5: memref<128x1xf32, #tpu.memory_space<vmem>>, %arg6: memref<128x2xbf16, #tpu.memory_space<vmem>>, %arg7: memref<128x2xf32, #tpu.memory_space<vmem>>) attributes {dimension_semantics = [#tpu.dimension_semantics<arbitrary>], iteration_bounds = array<i64: 1>, scalar_prefetch = 0 : i64, scratch_operands = 1 : i64, tpu.core_type = #tpu.core_type<tc>, window_params = [{transform_indices = @transform_0, window_bounds = array<i64: 2, 4, 256>}, {pipeline_mode = #tpu.pipeline_mode<synchronous>, transform_indices = @transform_1, window_bounds = array<i64: 128, 4>}, {pipeline_mode = #tpu.pipeline_mode<synchronous>, transform_indices = @transform_2, window_bounds = array<i64: 128, 1>}, {pipeline_mode = #tpu.pipeline_mode<synchronous>, transform_indices = @transform_3, window_bounds = array<i64: 128, 1>}, {pipeline_mode = #tpu.pipeline_mode<synchronous>, transform_indices = @transform_4, window_bounds = array<i64: 128, 1>}, {pipeline_mode = #tpu.pipeline_mode<synchronous>, transform_indices = @transform_5, window_bounds = array<i64: 128, 2>}]} {
    %c0_i32 = arith.constant 0 : i32
    %0 = arith.cmpi eq, %arg0, %c0_i32 : i32
    %1 = arith.extui %0 : i1 to i32
    %c0_i32_0 = arith.constant 0 : i32
    %2 = arith.cmpi ne, %1, %c0_i32_0 : i32
    scf.if %2 {
      %cst_22 = arith.constant 0.000000e+00 : f32
      %49 = vector.broadcast %cst_22 : f32 to vector<128x2xf32>
      %c0_23 = arith.constant 0 : index
      %c0_24 = arith.constant 0 : index
      %50 = vector.load %arg7[%c0_23, %c0_24] : memref<128x2xf32, #tpu.memory_space<vmem>>, vector<128x2xf32>
      tpu.vector_store %arg7[%c0_23, %c0_24], %49 {strides = array<i32>} : memref<128x2xf32, #tpu.memory_space<vmem>>, vector<128x2xf32>,
    } else {
    }
    %c0 = arith.constant 0 : index
    %c0_1 = arith.constant 0 : index
    %3 = vector.load %arg2[%c0, %c0_1] : memref<128x4xf32, #tpu.memory_space<vmem>>, vector<128x4xf32>
    %c0_2 = arith.constant 0 : index
    %c0_3 = arith.constant 0 : index
    %4 = vector.load %arg3[%c0_2, %c0_3] : memref<128x1xf32, #tpu.memory_space<vmem>>, vector<128x1xf32>
    %c0_4 = arith.constant 0 : index
    %c0_5 = arith.constant 0 : index
    %c0_6 = arith.constant 0 : index
    %5 = vector.load %arg1[%c0_4, %c0_5, %c0_6] : memref<2x4x256xf32, #tpu.memory_space<vmem>>, vector<1x4x256xf32>
    %6 = vector.shape_cast %5 : vector<1x4x256xf32> to vector<4x256xf32>
    %cst = arith.constant dense<0.000000e+00> : vector<128x256xf32>
    %7 = tpu.matmul %3, %6, %cst {dimension_numbers = #tpu.dot_dimension_numbers<[1], [0], [0], [1], [0, 0, 1, 1], [], []>} : vector<128x4xf32>, vector<4x256xf32>, vector<128x256xf32> -> vector<128x256xf32>
    %8 = vector.broadcast %4 : vector<128x1xf32> to vector<128x256xf32>
    %9 = arith.addf %7, %8 : vector<128x256xf32>
    %10 = arith.negf %9 : vector<128x256xf32>
    %11 = math.exp %10 : vector<128x256xf32>
    %cst_7 = arith.constant 1.000000e+00 : f32
    %12 = vector.broadcast %cst_7 : f32 to vector<128x256xf32>
    %13 = arith.addf %12, %11 : vector<128x256xf32>
    %14 = arith.divf %12, %13 : vector<128x256xf32>
    %15 = arith.mulf %9, %14 : vector<128x256xf32>
    %cst_8 = arith.constant dense<0.000000e+00> : vector<128xf32>
    %16 = vector.multi_reduction <add>, %15, %cst_8 [1] : vector<128x256xf32> to vector<128xf32>
    %17 = vector.shape_cast %16 : vector<128xf32> to vector<128x1xf32>
    %c1 = arith.constant 1 : index
    %c0_9 = arith.constant 0 : index
    %c0_10 = arith.constant 0 : index
    %18 = vector.load %arg1[%c1, %c0_9, %c0_10] : memref<2x4x256xf32, #tpu.memory_space<vmem>>, vector<1x4x256xf32>
    %19 = vector.shape_cast %18 : vector<1x4x256xf32> to vector<4x256xf32>
    %cst_11 = arith.constant dense<0.000000e+00> : vector<128x256xf32>
    %20 = tpu.matmul %3, %19, %cst_11 {dimension_numbers = #tpu.dot_dimension_numbers<[1], [0], [0], [1], [0, 0, 1, 1], [], []>} : vector<128x4xf32>, vector<4x256xf32>, vector<128x256xf32> -> vector<128x256xf32>
    %21 = vector.broadcast %4 : vector<128x1xf32> to vector<128x256xf32>
    %22 = arith.addf %20, %21 : vector<128x256xf32>
    %23 = arith.negf %22 : vector<128x256xf32>
    %24 = math.exp %23 : vector<128x256xf32>
    %cst_12 = arith.constant 1.000000e+00 : f32
    %25 = vector.broadcast %cst_12 : f32 to vector<128x256xf32>
    %26 = arith.addf %25, %24 : vector<128x256xf32>
    %27 = arith.divf %25, %26 : vector<128x256xf32>
    %28 = arith.mulf %22, %27 : vector<128x256xf32>
    %cst_13 = arith.constant dense<0.000000e+00> : vector<128xf32>
    %29 = vector.multi_reduction <add>, %28, %cst_13 [1] : vector<128x256xf32> to vector<128xf32>
    %30 = vector.shape_cast %29 : vector<128xf32> to vector<128x1xf32>
    %31 = tpu.iota {dimensions = array<i32: 1>} : vector<128x2xi32>
    %cst_14 = arith.constant 0.000000e+00 : f32
    %32 = vector.broadcast %cst_14 : f32 to vector<128x2xf32>
    %c0_i32_15 = arith.constant 0 : i32
    %33 = vector.broadcast %c0_i32_15 : i32 to vector<128x2xi32>
    %34 = arith.cmpi eq, %31, %33 : vector<128x2xi32>
    %35 = vector.shape_cast %17 : vector<128x1xf32> to vector<128x1xf32>
    %36 = vector.broadcast %35 : vector<128x1xf32> to vector<128x2xf32>
    %37 = arith.select %34, %36, %32 : vector<128x2xi1>, vector<128x2xf32>
    %c1_i32 = arith.constant 1 : i32
    %38 = vector.broadcast %c1_i32 : i32 to vector<128x2xi32>
    %39 = arith.cmpi eq, %31, %38 : vector<128x2xi32>
    %40 = vector.shape_cast %30 : vector<128x1xf32> to vector<128x1xf32>
    %41 = vector.broadcast %40 : vector<128x1xf32> to vector<128x2xf32>
    %42 = arith.select %39, %41, %37 : vector<128x2xi1>, vector<128x2xf32>
    %c0_16 = arith.constant 0 : index
    %c0_17 = arith.constant 0 : index
    %43 = vector.load %arg7[%c0_16, %c0_17] : memref<128x2xf32, #tpu.memory_space<vmem>>, vector<128x2xf32>
    %44 = arith.addf %43, %42 : vector<128x2xf32>
    %c0_18 = arith.constant 0 : index
    %c0_19 = arith.constant 0 : index
    %45 = vector.load %arg7[%c0_18, %c0_19] : memref<128x2xf32, #tpu.memory_space<vmem>>, vector<128x2xf32>
    tpu.vector_store %arg7[%c0_18, %c0_19], %44 {strides = array<i32>} : memref<128x2xf32, #tpu.memory_space<vmem>>, vector<128x2xf32>,
    %c0_i32_20 = arith.constant 0 : i32
    %46 = arith.cmpi eq, %arg0, %c0_i32_20 : i32
    %47 = arith.extui %46 : i1 to i32
    %c0_i32_21 = arith.constant 0 : i32
    %48 = arith.cmpi ne, %47, %c0_i32_21 : i32
    scf.if %48 {
      %c0_22 = arith.constant 0 : index
      %c0_23 = arith.constant 0 : index
      %49 = vector.load %arg7[%c0_22, %c0_23] : memref<128x2xf32, #tpu.memory_space<vmem>>, vector<128x2xf32>
      %cst_24 = arith.constant 3.906250e-03 : f32
      %50 = vector.broadcast %cst_24 : f32 to vector<128x2xf32>
      %51 = arith.mulf %49, %50 : vector<128x2xf32>
      %cst_25 = arith.constant dense<0.000000e+00> : vector<2xf32>
      %52 = vector.multi_reduction <add>, %51, %cst_25 [0] : vector<128x2xf32> to vector<2xf32>
      %53 = vector.shape_cast %52 : vector<2xf32> to vector<1x2xf32>
      %cst_26 = arith.constant 1.280000e+02 : f32
      %54 = vector.broadcast %cst_26 : f32 to vector<1x2xf32>
      %55 = arith.divf %53, %54 : vector<1x2xf32>
      %56 = vector.broadcast %55 : vector<1x2xf32> to vector<128x2xf32>
      %57 = arith.subf %51, %56 : vector<128x2xf32>
      %58 = arith.mulf %57, %57 : vector<128x2xf32>
      %cst_27 = arith.constant dense<0.000000e+00> : vector<2xf32>
      %59 = vector.multi_reduction <add>, %58, %cst_27 [0] : vector<128x2xf32> to vector<2xf32>
      %60 = vector.shape_cast %59 : vector<2xf32> to vector<1x2xf32>
      %cst_28 = arith.constant 1.280000e+02 : f32
      %61 = vector.broadcast %cst_28 : f32 to vector<1x2xf32>
      %62 = arith.divf %60, %61 : vector<1x2xf32>
      %63 = vector.broadcast %55 : vector<1x2xf32> to vector<128x2xf32>
      %64 = arith.subf %51, %63 : vector<128x2xf32>
      %cst_29 = arith.constant 9.99999974E-6 : f32
      %65 = vector.broadcast %cst_29 : f32 to vector<1x2xf32>
      %66 = arith.addf %62, %65 : vector<1x2xf32>
      %67 = math.rsqrt %66 : vector<1x2xf32>
      %68 = vector.broadcast %67 : vector<1x2xf32> to vector<128x2xf32>
      %69 = arith.mulf %64, %68 : vector<128x2xf32>
      %c0_30 = arith.constant 0 : index
      %c0_31 = arith.constant 0 : index
      %70 = vector.load %arg4[%c0_30, %c0_31] : memref<128x1xf32, #tpu.memory_space<vmem>>, vector<128x1xf32>
      %71 = vector.broadcast %70 : vector<128x1xf32> to vector<128x2xf32>
      %72 = arith.mulf %69, %71 : vector<128x2xf32>
      %c0_32 = arith.constant 0 : index
      %c0_33 = arith.constant 0 : index
      %73 = vector.load %arg5[%c0_32, %c0_33] : memref<128x1xf32, #tpu.memory_space<vmem>>, vector<128x1xf32>
      %74 = vector.broadcast %73 : vector<128x1xf32> to vector<128x2xf32>
      %75 = arith.addf %72, %74 : vector<128x2xf32>
      %76 = arith.truncf %75 : vector<128x2xf32> to vector<128x2xbf16>
      %c0_34 = arith.constant 0 : index
      %c0_35 = arith.constant 0 : index
      %77 = vector.load %arg6[%c0_34, %c0_35] : memref<128x2xbf16, #tpu.memory_space<vmem>>, vector<128x2xbf16>
      tpu.vector_store %arg6[%c0_34, %c0_35], %76 {strides = array<i32>} : memref<128x2xbf16, #tpu.memory_space<vmem>>, vector<128x2xbf16>,
    } else {
    }
    return
  }
  func.func @transform_0(%arg0: i32) -> (i32, i32, i32) {
    %c0_i32 = arith.constant 0 : i32
    %c0_i32_0 = arith.constant 0 : i32
    %c0_i32_1 = arith.constant 0 : i32
    return %c0_i32, %c0_i32_0, %arg0 : i32, i32, i32
  }
  func.func @transform_1(%arg0: i32) -> (i32, i32) {
    %c0_i32 = arith.constant 0 : i32
    %c0_i32_0 = arith.constant 0 : i32
    %c0_i32_1 = arith.constant 0 : i32
    return %c0_i32, %c0_i32_0 : i32, i32
  }
  func.func @transform_2(%arg0: i32) -> (i32, i32) {
    %c0_i32 = arith.constant 0 : i32
    %c0_i32_0 = arith.constant 0 : i32
    %c0_i32_1 = arith.constant 0 : i32
    return %c0_i32, %c0_i32_0 : i32, i32
  }
  func.func @transform_3(%arg0: i32) -> (i32, i32) {
    %c0_i32 = arith.constant 0 : i32
    %c0_i32_0 = arith.constant 0 : i32
    %c0_i32_1 = arith.constant 0 : i32
    return %c0_i32, %c0_i32_0 : i32, i32
  }
  func.func @transform_4(%arg0: i32) -> (i32, i32) {
    %c0_i32 = arith.constant 0 : i32
    %c0_i32_0 = arith.constant 0 : i32
    %c0_i32_1 = arith.constant 0 : i32
    return %c0_i32, %c0_i32_0 : i32, i32
  }
  func.func @transform_5(%arg0: i32) -> (i32, i32) {
    %c0_i32 = arith.constant 0 : i32
    %c0_i32_0 = arith.constant 0 : i32
    %c0_i32_1 = arith.constant 0 : i32
    return %c0_i32, %c0_i32_0 : i32, i32
  }
}

</mosaic_0001>

<llo_original>
// kernel: tpu_custom_call.1
$region0: #{tpu_custom_call.1}
  #allocation0 [shape = 'u32[]', space=smem, size = 0x4, offset = 0x4, fixed_abs, tag = 'smem constant byte address 0x4 - core index']
  #allocation1 [shape = 'u32[144,128]{1,0:T(1,128)}', space=vmem, size = 0x12000, scoped, tag = 'internal scratch']
  #allocation2 [shape = 'f32[128,2]{1,0:T(8,128)}', space=vmem, size = 0x10000, scoped, tag = 'scratch operand']
  %s0 = inlined_call_operand.vmem [shape: f32[2,4,256], index: 0, kind: input, shape index: {}]
  %s1 = inlined_call_operand.vmem [shape: f32[128,4], index: 1, kind: input, shape index: {}]
  %s2 = inlined_call_operand.vmem [shape: f32[128,1], index: 2, kind: input, shape index: {}]
  %s3 = inlined_call_operand.vmem [shape: f32[128,1], index: 3, kind: input, shape index: {}]
  %s4 = inlined_call_operand.vmem [shape: f32[128,1], index: 4, kind: input, shape index: {}]
  %s5 = inlined_call_operand.vmem [shape: bf16[128,2], index: 5, kind: output, shape index: {}]
  %s6 = sld [smem:[#allocation0]]
  $region38: #{tpu_custom_call.1} parent=0
    _
  %s8 = ssub.s32 1, %s6
  %s9 = scalar_select 0, %s8, %s6
  // Predicated region
  $region2: #{tpu_custom_call.1} parent=0 // pred_check
    _
  $region3: #{tpu_custom_call.1} parent=0 // pred_check_branch
    %11 = sbr.rel (0) target = $region5
  $region4: #{tpu_custom_call.1} parent=0 // pred_region
    _
  $region5: #{tpu_custom_call.1} parent=0 // pred_fallthru
    _
  // Predicated region
  $region6: #{tpu_custom_call.1} parent=0 // pred_check
    _
  $region7: #{tpu_custom_call.1} parent=0 // pred_check_branch
    %13 = sbr.rel (0) target = $region9
  $region8: #{tpu_custom_call.1} parent=0 // pred_region
    _
  $region9: #{tpu_custom_call.1} parent=0 // pred_fallthru
    _
  // Predicated region
  $region10: #{tpu_custom_call.1} parent=0 // pred_check
    _
  $region11: #{tpu_custom_call.1} parent=0 // pred_check_branch
    %15 = sbr.rel (0) target = $region13
  $region12: #{tpu_custom_call.1} parent=0 // pred_region
    _
  $region13: #{tpu_custom_call.1} parent=0 // pred_fallthru
    _
  // Predicated region
  $region14: #{tpu_custom_call.1} parent=0 // pred_check
    _
  $region15: #{tpu_custom_call.1} parent=0 // pred_check_branch
    %17 = sbr.rel (0) target = $region17
  $region16: #{tpu_custom_call.1} parent=0 // pred_region
    _
  $region17: #{tpu_custom_call.1} parent=0 // pred_fallthru
    _
  // Predicated region
  $region18: #{tpu_custom_call.1} parent=0 // pred_check
    _
  $region19: #{tpu_custom_call.1} parent=0 // pred_check_branch
    %19 = sbr.rel (0) target = $region21
  $region20: #{tpu_custom_call.1} parent=0 // pred_region
    _
  $region21: #{tpu_custom_call.1} parent=0 // pred_fallthru
    _
  %p20 = scmp.eq.s32.totalorder 0, 0
  // Predicated region
  $region22: #{tpu_custom_call.1} parent=0 // pred_check
    %p21 = pneg %p20
  $region23: #{tpu_custom_call.1} parent=0 // pred_check_branch
    %23 = sbr.rel (%p21) target = $region25
  $region24: #{tpu_custom_call.1} parent=0 // pred_region
    %vm24 = vcmask 15360
    %25 = vst.msk [vmem:[#allocation2] sm:$0xff] %vm24, 0.0
    %26 = vst.msk [vmem:[#allocation2 + $0x8] sm:$0xff] %vm24, 0.0
    %27 = vst.msk [vmem:[#allocation2 + $0x10] sm:$0xff] %vm24, 0.0
    %28 = vst.msk [vmem:[#allocation2 + $0x18] sm:$0xff] %vm24, 0.0
    %29 = vst.msk [vmem:[#allocation2 + $0x20] sm:$0xff] %vm24, 0.0
    %30 = vst.msk [vmem:[#allocation2 + $0x28] sm:$0xff] %vm24, 0.0
    %31 = vst.msk [vmem:[#allocation2 + $0x30] sm:$0xff] %vm24, 0.0
    %32 = vst.msk [vmem:[#allocation2 + $0x38] sm:$0xff] %vm24, 0.0
    %33 = vst.msk [vmem:[#allocation2 + $0x40] sm:$0xff] %vm24, 0.0
    %34 = vst.msk [vmem:[#allocation2 + $0x48] sm:$0xff] %vm24, 0.0
    %35 = vst.msk [vmem:[#allocation2 + $0x50] sm:$0xff] %vm24, 0.0
    %36 = vst.msk [vmem:[#allocation2 + $0x58] sm:$0xff] %vm24, 0.0
    %37 = vst.msk [vmem:[#allocation2 + $0x60] sm:$0xff] %vm24, 0.0
    %38 = vst.msk [vmem:[#allocation2 + $0x68] sm:$0xff] %vm24, 0.0
    %39 = vst.msk [vmem:[#allocation2 + $0x70] sm:$0xff] %vm24, 0.0
    %40 = vst.msk [vmem:[#allocation2 + $0x78] sm:$0xff] %vm24, 0.0
  $region25: #{tpu_custom_call.1} parent=0 // pred_fallthru
    _
  %v41 = vld [vmem:[%s1] sm:$0xff]
  %v42 = vld [vmem:[%s1 + $0x8] sm:$0xff]
  %v43 = vld [vmem:[%s1 + $0x10] sm:$0xff]
  %v44 = vld [vmem:[%s1 + $0x18] sm:$0xff]
  %v45 = vld [vmem:[%s1 + $0x20] sm:$0xff]
  %v46 = vld [vmem:[%s1 + $0x28] sm:$0xff]
  %v47 = vld [vmem:[%s1 + $0x30] sm:$0xff]
  %v48 = vld [vmem:[%s1 + $0x38] sm:$0xff]
  %v49 = vld [vmem:[%s1 + $0x40] sm:$0xff]
  %v50 = vld [vmem:[%s1 + $0x48] sm:$0xff]
  %v51 = vld [vmem:[%s1 + $0x50] sm:$0xff]
  %v52 = vld [vmem:[%s1 + $0x58] sm:$0xff]
  %v53 = vld [vmem:[%s1 + $0x60] sm:$0xff]
  %v54 = vld [vmem:[%s1 + $0x68] sm:$0xff]
  %v55 = vld [vmem:[%s1 + $0x70] sm:$0xff]
  %v56 = vld [vmem:[%s1 + $0x78] sm:$0xff]
  %v57 = vld [vmem:[%s2] sm:$0xff]
  %v58 = vld [vmem:[%s2 + $0x8] sm:$0xff]
  %v59 = vld [vmem:[%s2 + $0x10] sm:$0xff]
  %v60 = vld [vmem:[%s2 + $0x18] sm:$0xff]
  %v61 = vld [vmem:[%s2 + $0x20] sm:$0xff]
  %v62 = vld [vmem:[%s2 + $0x28] sm:$0xff]
  %v63 = vld [vmem:[%s2 + $0x30] sm:$0xff]
  %v64 = vld [vmem:[%s2 + $0x38] sm:$0xff]
  %v65 = vld [vmem:[%s2 + $0x40] sm:$0xff]
  %v66 = vld [vmem:[%s2 + $0x48] sm:$0xff]
  %v67 = vld [vmem:[%s2 + $0x50] sm:$0xff]
  %v68 = vld [vmem:[%s2 + $0x58] sm:$0xff]
  %v69 = vld [vmem:[%s2 + $0x60] sm:$0xff]
  %v70 = vld [vmem:[%s2 + $0x68] sm:$0xff]
  %v71 = vld [vmem:[%s2 + $0x70] sm:$0xff]
  %v72 = vld [vmem:[%s2 + $0x78] sm:$0xff]
  %v73 = vld [vmem:[%s0] sm:$0xff]
  %75 = vset.pattern.permute.xlu0 0
  %76 = vperm.xlu0 %75, %v57
  %v77 = vpop.permute.xlu0 %76
  %80 = vset.pattern.permute.xlu0 0
  %81 = vperm.xlu0 %80, %v58
  %v82 = vpop.permute.xlu0 %81
  %85 = vset.pattern.permute.xlu0 0
  %86 = vperm.xlu0 %85, %v59
  %v87 = vpop.permute.xlu0 %86
  %90 = vset.pattern.permute.xlu0 0
  %91 = vperm.xlu0 %90, %v60
  %v92 = vpop.permute.xlu0 %91
  %95 = vset.pattern.permute.xlu0 0
  %96 = vperm.xlu0 %95, %v61
  %v97 = vpop.permute.xlu0 %96
  %100 = vset.pattern.permute.xlu0 0
  %101 = vperm.xlu0 %100, %v62
  %v102 = vpop.permute.xlu0 %101
  %105 = vset.pattern.permute.xlu0 0
  %106 = vperm.xlu0 %105, %v63
  %v107 = vpop.permute.xlu0 %106
  %110 = vset.pattern.permute.xlu0 0
  %111 = vperm.xlu0 %110, %v64
  %v112 = vpop.permute.xlu0 %111
  %115 = vset.pattern.permute.xlu0 0
  %116 = vperm.xlu0 %115, %v65
  %v117 = vpop.permute.xlu0 %116
  %120 = vset.pattern.permute.xlu0 0
  %121 = vperm.xlu0 %120, %v66
  %v122 = vpop.permute.xlu0 %121
  %125 = vset.pattern.permute.xlu0 0
  %126 = vperm.xlu0 %125, %v67
  %v127 = vpop.permute.xlu0 %126
  %130 = vset.pattern.permute.xlu0 0
  %131 = vperm.xlu0 %130, %v68
  %v132 = vpop.permute.xlu0 %131
  %135 = vset.pattern.permute.xlu0 0
  %136 = vperm.xlu0 %135, %v69
  %v137 = vpop.permute.xlu0 %136
  %140 = vset.pattern.permute.xlu0 0
  %141 = vperm.xlu0 %140, %v70
  %v142 = vpop.permute.xlu0 %141
  %145 = vset.pattern.permute.xlu0 0
  %146 = vperm.xlu0 %145, %v71
  %v147 = vpop.permute.xlu0 %146
  %150 = vset.pattern.permute.xlu0 0
  %151 = vperm.xlu0 %150, %v72
  %v152 = vpop.permute.xlu0 %151
  %v155 = vcombine.high %v73, %v73
  %vm156 = vcmask 31744
  %v158 = vsel %vm156, %v41, 0
  %v161 = vsel %vm156, %v42, 0
  %v164 = vsel %vm156, %v43, 0
  %v167 = vsel %vm156, %v44, 0
  %v170 = vsel %vm156, %v45, 0
  %v173 = vsel %vm156, %v46, 0
  %v176 = vsel %vm156, %v47, 0
  %v179 = vsel %vm156, %v48, 0
  %v182 = vsel %vm156, %v49, 0
  %v185 = vsel %vm156, %v50, 0
  %v188 = vsel %vm156, %v51, 0
  %v191 = vsel %vm156, %v52, 0
  %v194 = vsel %vm156, %v53, 0
  %v197 = vsel %vm156, %v54, 0
  %v200 = vsel %vm156, %v55, 0
  %v203 = vsel %vm156, %v56, 0
  %vm205 = vcmask 1043456
  %v206 = vsel %vm205, %v73, 0
  %v208 = vsel %vm205, %v155, 0
  %210 = vmatprep.subr.mxu0 %v208
  %211 = vmatpush1.msra.mxu0 %v206
  %212 = vmatprep.subr.mxu0 0.0
  %213 = vmatpush1.msra.mxu0 0.0
  %214 = vmatprep.subr.mxu0 0.0
  %215 = vmatpush1.msra.mxu0 0.0
  %216 = vmatprep.subr.mxu0 0.0
  %217 = vmatpush1.msra.mxu0 0.0
  %218 = vmatprep.subr.mxu0 0.0
  %219 = vmatpush1.msra.mxu0 0.0
  %220 = vmatprep.subr.mxu0 0.0
  %221 = vmatpush1.msra.mxu0 0.0
  %222 = vmatprep.subr.mxu0 0.0
  %223 = vmatpush1.msra.mxu0 0.0
  %224 = vmatprep.subr.mxu0 0.0
  %225 = vmatpush1.msra.mxu0 0.0
  %226 = vmatprep.subr.mxu0 0.0
  %227 = vmatpush1.msra.mxu0 0.0
  %228 = vmatprep.subr.mxu0 0.0
  %229 = vmatpush1.msra.mxu0 0.0
  %230 = vmatprep.subr.mxu0 0.0
  %231 = vmatpush1.msra.mxu0 0.0
  %232 = vmatprep.subr.mxu0 0.0
  %233 = vmatpush1.msra.mxu0 0.0
  %234 = vmatprep.subr.mxu0 0.0
  %235 = vmatpush1.msra.mxu0 0.0
  %236 = vmatprep.subr.mxu0 0.0
  %237 = vmatpush1.msra.mxu0 0.0
  %238 = vmatprep.subr.mxu0 0.0
  %239 = vmatpush1.msra.mxu0 0.0
  %240 = vmatprep.subr.mxu0 0.0
  %241 = vmatpush1.msra.mxu0 0.0
  %242 = vmatprep.subr.mxu0 0.0
  %243 = vmatpush1.msra.mxu0 0.0
  %244 = vmatprep.subr.mxu0 0.0
  %245 = vmatpush1.msra.mxu0 0.0
  %246 = vmatprep.subr.mxu0 0.0
  %247 = vmatpush1.msra.mxu0 0.0
  %248 = vmatprep.subr.mxu0 0.0
  %249 = vmatpush1.msra.mxu0 0.0
  %250 = vmatprep.subr.mxu0 0.0
  %251 = vmatpush1.msra.mxu0 0.0
  %252 = vmatprep.subr.mxu0 0.0
  %253 = vmatpush1.msra.mxu0 0.0
  %254 = vmatprep.subr.mxu0 0.0
  %255 = vmatpush1.msra.mxu0 0.0
  %256 = vmatprep.subr.mxu0 0.0
  %257 = vmatpush1.msra.mxu0 0.0
  %258 = vmatprep.subr.mxu0 0.0
  %259 = vmatpush1.msra.mxu0 0.0
  %260 = vmatprep.subr.mxu0 0.0
  %261 = vmatpush1.msra.mxu0 0.0
  %262 = vmatprep.subr.mxu0 0.0
  %263 = vmatpush1.msra.mxu0 0.0
  %264 = vmatprep.subr.mxu0 0.0
  %265 = vmatpush1.msra.mxu0 0.0
  %266 = vmatprep.subr.mxu0 0.0
  %267 = vmatpush1.msra.mxu0 0.0
  %268 = vmatprep.subr.mxu0 0.0
  %269 = vmatpush1.msra.mxu0 0.0
  %270 = vmatprep.subr.mxu0 0.0
  %271 = vmatpush1.msra.mxu0 0.0
  %272 = vmatprep.subr.mxu0 0.0
  %273 = vmatpush1.msra.mxu0 0.0
  %274 = vmatprep.mubr.f32.mxu0 0.0
  %275 = vmatmul.mubr.f32.gmra.mrb[0].mxu0 %v158
  %v276 = vpop.f32.mrb[0].mxu0
  %v277 = vadd.f32 %v77, %v276
  %v278 = vpop.f32.mrb[0].mxu0
  %v279 = vadd.f32 %v77, %v278
  %280 = vmatprep.mubr.f32.mxu0 0.0
  %281 = vmatmul.mubr.f32.gmra.mrb[0].mxu0 %v161
  %v282 = vpop.f32.mrb[0].mxu0
  %v283 = vadd.f32 %v82, %v282
  %v284 = vpop.f32.mrb[0].mxu0
  %v285 = vadd.f32 %v82, %v284
  %286 = vmatprep.mubr.f32.mxu0 0.0
  %287 = vmatmul.mubr.f32.gmra.mrb[0].mxu0 %v164
  %v288 = vpop.f32.mrb[0].mxu0
  %v289 = vadd.f32 %v87, %v288
  %v290 = vpop.f32.mrb[0].mxu0
  %v291 = vadd.f32 %v87, %v290
  %292 = vmatprep.mubr.f32.mxu0 0.0
  %293 = vmatmul.mubr.f32.gmra.mrb[0].mxu0 %v167
  %v294 = vpop.f32.mrb[0].mxu0
  %v295 = vadd.f32 %v92, %v294
  %v296 = vpop.f32.mrb[0].mxu0
  %v297 = vadd.f32 %v92, %v296
  %298 = vmatprep.mubr.f32.mxu0 0.0
  %299 = vmatmul.mubr.f32.gmra.mrb[0].mxu0 %v170
  %v300 = vpop.f32.mrb[0].mxu0
  %v301 = vadd.f32 %v97, %v300
  %v302 = vpop.f32.mrb[0].mxu0
  %v303 = vadd.f32 %v97, %v302
  %304 = vmatprep.mubr.f32.mxu0 0.0
  %305 = vmatmul.mubr.f32.gmra.mrb[0].mxu0 %v173
  %v306 = vpop.f32.mrb[0].mxu0
  %v307 = vadd.f32 %v102, %v306
  %v308 = vpop.f32.mrb[0].mxu0
  %v309 = vadd.f32 %v102, %v308
  %310 = vmatprep.mubr.f32.mxu0 0.0
  %311 = vmatmul.mubr.f32.gmra.mrb[0].mxu0 %v176
  %v312 = vpop.f32.mrb[0].mxu0
  %v313 = vadd.f32 %v107, %v312
  %v314 = vpop.f32.mrb[0].mxu0
  %v315 = vadd.f32 %v107, %v314
  %316 = vmatprep.mubr.f32.mxu0 0.0
  %317 = vmatmul.mubr.f32.gmra.mrb[0].mxu0 %v179
  %v318 = vpop.f32.mrb[0].mxu0
  %v319 = vadd.f32 %v112, %v318
  %v320 = vpop.f32.mrb[0].mxu0
  %v321 = vadd.f32 %v112, %v320
  %322 = vmatprep.mubr.f32.mxu0 0.0
  %323 = vmatmul.mubr.f32.gmra.mrb[0].mxu0 %v182
  %v324 = vpop.f32.mrb[0].mxu0
  %v325 = vadd.f32 %v117, %v324
  %v326 = vpop.f32.mrb[0].mxu0
  %v327 = vadd.f32 %v117, %v326
  %328 = vmatprep.mubr.f32.mxu0 0.0
  %329 = vmatmul.mubr.f32.gmra.mrb[0].mxu0 %v185
  %v330 = vpop.f32.mrb[0].mxu0
  %v331 = vadd.f32 %v122, %v330
  %v332 = vpop.f32.mrb[0].mxu0
  %v333 = vadd.f32 %v122, %v332
  %334 = vmatprep.mubr.f32.mxu0 0.0
  %335 = vmatmul.mubr.f32.gmra.mrb[0].mxu0 %v188
  %v336 = vpop.f32.mrb[0].mxu0
  %v337 = vadd.f32 %v127, %v336
  %v338 = vpop.f32.mrb[0].mxu0
  %v339 = vadd.f32 %v127, %v338
  %340 = vmatprep.mubr.f32.mxu0 0.0
  %341 = vmatmul.mubr.f32.gmra.mrb[0].mxu0 %v191
  %v342 = vpop.f32.mrb[0].mxu0
  %v343 = vadd.f32 %v132, %v342
  %v344 = vpop.f32.mrb[0].mxu0
  %v345 = vadd.f32 %v132, %v344
  %346 = vmatprep.mubr.f32.mxu0 0.0
  %347 = vmatmul.mubr.f32.gmra.mrb[0].mxu0 %v194
  %v348 = vpop.f32.mrb[0].mxu0
  %v349 = vadd.f32 %v137, %v348
  %v350 = vpop.f32.mrb[0].mxu0
  %v351 = vadd.f32 %v137, %v350
  %352 = vmatprep.mubr.f32.mxu0 0.0
  %353 = vmatmul.mubr.f32.gmra.mrb[0].mxu0 %v197
  %v354 = vpop.f32.mrb[0].mxu0
  %v355 = vadd.f32 %v142, %v354
  %v356 = vpop.f32.mrb[0].mxu0
  %v357 = vadd.f32 %v142, %v356
  %358 = vmatprep.mubr.f32.mxu0 0.0
  %359 = vmatmul.mubr.f32.gmra.mrb[0].mxu0 %v200
  %v360 = vpop.f32.mrb[0].mxu0
  %v361 = vadd.f32 %v147, %v360
  %v362 = vpop.f32.mrb[0].mxu0
  %v363 = vadd.f32 %v147, %v362
  %364 = vmatprep.mubr.f32.mxu0 0.0
  %365 = vmatmul.mubr.f32.gmra.mrb[0].mxu0 %v203
  %v366 = vpop.f32.mrb[0].mxu0
  %v367 = vadd.f32 %v152, %v366
  %v368 = vpop.f32.mrb[0].mxu0
  %v369 = vadd.f32 %v152, %v368
  %370 = vdwg.mxu0
  %v371 = vxor.u32 %v277, 2147483648
  %v372 = vxor.u32 %v279, 2147483648
  %v373 = vxor.u32 %v283, 2147483648
  %v374 = vxor.u32 %v285, 2147483648
  %v375 = vxor.u32 %v289, 2147483648
  %v376 = vxor.u32 %v291, 2147483648
  %v377 = vxor.u32 %v295, 2147483648
  %v378 = vxor.u32 %v297, 2147483648
  %v379 = vxor.u32 %v301, 2147483648
  %v380 = vxor.u32 %v303, 2147483648
  %v381 = vxor.u32 %v307, 2147483648
  %v382 = vxor.u32 %v309, 2147483648
  %v383 = vxor.u32 %v313, 2147483648
  %v384 = vxor.u32 %v315, 2147483648
  %v385 = vxor.u32 %v319, 2147483648
  %v386 = vxor.u32 %v321, 2147483648
  %v387 = vxor.u32 %v325, 2147483648
  %v388 = vxor.u32 %v327, 2147483648
  %v389 = vxor.u32 %v331, 2147483648
  %v390 = vxor.u32 %v333, 2147483648
  %v391 = vxor.u32 %v337, 2147483648
  %v392 = vxor.u32 %v339, 2147483648
  %v393 = vxor.u32 %v343, 2147483648
  %v394 = vxor.u32 %v345, 2147483648
  %v395 = vxor.u32 %v349, 2147483648
  %v396 = vxor.u32 %v351, 2147483648
  %v397 = vxor.u32 %v355, 2147483648
  %v398 = vxor.u32 %v357, 2147483648
  %v399 = vxor.u32 %v361, 2147483648
  %v400 = vxor.u32 %v363, 2147483648
  %v401 = vxor.u32 %v367, 2147483648
  %v402 = vxor.u32 %v369, 2147483648
  %v403 = vmul.f32 %v371, 1.442695
  %v404 = vpow.pop %v403
  %v405 = vmul.f32 %v372, 1.442695
  %v406 = vpow.pop %v405
  %v407 = vmul.f32 %v373, 1.442695
  %v408 = vpow.pop %v407
  %v409 = vmul.f32 %v374, 1.442695
  %v410 = vpow.pop %v409
  %v411 = vmul.f32 %v375, 1.442695
  %v412 = vpow.pop %v411
  %v413 = vmul.f32 %v376, 1.442695
  %v414 = vpow.pop %v413
  %v415 = vmul.f32 %v377, 1.442695
  %v416 = vpow.pop %v415
  %v417 = vmul.f32 %v378, 1.442695
  %v418 = vpow.pop %v417
  %v419 = vmul.f32 %v379, 1.442695
  %v420 = vpow.pop %v419
  %v421 = vmul.f32 %v380, 1.442695
  %v422 = vpow.pop %v421
  %v423 = vmul.f32 %v381, 1.442695
  %v424 = vpow.pop %v423
  %v425 = vmul.f32 %v382, 1.442695
  %v426 = vpow.pop %v425
  %v427 = vmul.f32 %v383, 1.442695
  %v428 = vpow.pop %v427
  %v429 = vmul.f32 %v384, 1.442695
  %v430 = vpow.pop %v429
  %v431 = vmul.f32 %v385, 1.442695
  %v432 = vpow.pop %v431
  %v433 = vmul.f32 %v386, 1.442695
  %v434 = vpow.pop %v433
  %v435 = vmul.f32 %v387, 1.442695
  %v436 = vpow.pop %v435
  %v437 = vmul.f32 %v388, 1.442695
  %v438 = vpow.pop %v437
  %v439 = vmul.f32 %v389, 1.442695
  %v440 = vpow.pop %v439
  %v441 = vmul.f32 %v390, 1.442695
  %v442 = vpow.pop %v441
  %v443 = vmul.f32 %v391, 1.442695
  %v444 = vpow.pop %v443
  %v445 = vmul.f32 %v392, 1.442695
  %v446 = vpow.pop %v445
  %v447 = vmul.f32 %v393, 1.442695
  %v448 = vpow.pop %v447
  %v449 = vmul.f32 %v394, 1.442695
  %v450 = vpow.pop %v449
  %v451 = vmul.f32 %v395, 1.442695
  %v452 = vpow.pop %v451
  %v453 = vmul.f32 %v396, 1.442695
  %v454 = vpow.pop %v453
  %v455 = vmul.f32 %v397, 1.442695
  %v456 = vpow.pop %v455
  %v457 = vmul.f32 %v398, 1.442695
  %v458 = vpow.pop %v457
  %v459 = vmul.f32 %v399, 1.442695
  %v460 = vpow.pop %v459
  %v461 = vmul.f32 %v400, 1.442695
  %v462 = vpow.pop %v461
  %v463 = vmul.f32 %v401, 1.442695
  %v464 = vpow.pop %v463
  %v465 = vmul.f32 %v402, 1.442695
  %v466 = vpow.pop %v465
  %v467 = vadd.f32 %v404, 1.0
  %v468 = vadd.f32 %v406, 1.0
  %v469 = vadd.f32 %v408, 1.0
  %v470 = vadd.f32 %v410, 1.0
  %v471 = vadd.f32 %v412, 1.0
  %v472 = vadd.f32 %v414, 1.0
  %v473 = vadd.f32 %v416, 1.0
  %v474 = vadd.f32 %v418, 1.0
  %v475 = vadd.f32 %v420, 1.0
  %v476 = vadd.f32 %v422, 1.0
  %v477 = vadd.f32 %v424, 1.0
  %v478 = vadd.f32 %v426, 1.0
  %v479 = vadd.f32 %v428, 1.0
  %v480 = vadd.f32 %v430, 1.0
  %v481 = vadd.f32 %v432, 1.0
  %v482 = vadd.f32 %v434, 1.0
  %v483 = vadd.f32 %v436, 1.0
  %v484 = vadd.f32 %v438, 1.0
  %v485 = vadd.f32 %v440, 1.0
  %v486 = vadd.f32 %v442, 1.0
  %v487 = vadd.f32 %v444, 1.0
  %v488 = vadd.f32 %v446, 1.0
  %v489 = vadd.f32 %v448, 1.0
  %v490 = vadd.f32 %v450, 1.0
  %v491 = vadd.f32 %v452, 1.0
  %v492 = vadd.f32 %v454, 1.0
  %v493 = vadd.f32 %v456, 1.0
  %v494 = vadd.f32 %v458, 1.0
  %v495 = vadd.f32 %v460, 1.0
  %v496 = vadd.f32 %v462, 1.0
  %v497 = vadd.f32 %v464, 1.0
  %v498 = vadd.f32 %v466, 1.0
  %v499 = vrcp.pop %v467
  %v500 = vmul.f32 1.0, %v499
  %v501 = vrcp.pop %v468
  %v502 = vmul.f32 1.0, %v501
  %v503 = vrcp.pop %v469
  %v504 = vmul.f32 1.0, %v503
  %v505 = vrcp.pop %v470
  %v506 = vmul.f32 1.0, %v505
  %v507 = vrcp.pop %v471
  %v508 = vmul.f32 1.0, %v507
  %v509 = vrcp.pop %v472
  %v510 = vmul.f32 1.0, %v509
  %v511 = vrcp.pop %v473
  %v512 = vmul.f32 1.0, %v511
  %v513 = vrcp.pop %v474
  %v514 = vmul.f32 1.0, %v513
  %v515 = vrcp.pop %v475
  %v516 = vmul.f32 1.0, %v515
  %v517 = vrcp.pop %v476
  %v518 = vmul.f32 1.0, %v517
  %v519 = vrcp.pop %v477
  %v520 = vmul.f32 1.0, %v519
  %v521 = vrcp.pop %v478
  %v522 = vmul.f32 1.0, %v521
  %v523 = vrcp.pop %v479
  %v524 = vmul.f32 1.0, %v523
  %v525 = vrcp.pop %v480
  %v526 = vmul.f32 1.0, %v525
  %v527 = vrcp.pop %v481
  %v528 = vmul.f32 1.0, %v527
  %v529 = vrcp.pop %v482
  %v530 = vmul.f32 1.0, %v529
  %v531 = vrcp.pop %v483
  %v532 = vmul.f32 1.0, %v531
  %v533 = vrcp.pop %v484
  %v534 = vmul.f32 1.0, %v533
  %v535 = vrcp.pop %v485
  %v536 = vmul.f32 1.0, %v535
  %v537 = vrcp.pop %v486
  %v538 = vmul.f32 1.0, %v537
  %v539 = vrcp.pop %v487
  %v540 = vmul.f32 1.0, %v539
  %v541 = vrcp.pop %v488
  %v542 = vmul.f32 1.0, %v541
  %v543 = vrcp.pop %v489
  %v544 = vmul.f32 1.0, %v543
  %v545 = vrcp.pop %v490
  %v546 = vmul.f32 1.0, %v545
  %v547 = vrcp.pop %v491
  %v548 = vmul.f32 1.0, %v547
  %v549 = vrcp.pop %v492
  %v550 = vmul.f32 1.0, %v549
  %v551 = vrcp.pop %v493
  %v552 = vmul.f32 1.0, %v551
  %v553 = vrcp.pop %v494
  %v554 = vmul.f32 1.0, %v553
  %v555 = vrcp.pop %v495
  %v556 = vmul.f32 1.0, %v555
  %v557 = vrcp.pop %v496
  %v558 = vmul.f32 1.0, %v557
  %v559 = vrcp.pop %v497
  %v560 = vmul.f32 1.0, %v559
  %v561 = vrcp.pop %v498
  %v562 = vmul.f32 1.0, %v561
  %v563 = vmul.f32 %v277, %v500
  %v564 = vmul.f32 %v279, %v502
  %v565 = vmul.f32 %v283, %v504
  %v566 = vmul.f32 %v285, %v506
  %v567 = vmul.f32 %v289, %v508
  %v568 = vmul.f32 %v291, %v510
  %v569 = vmul.f32 %v295, %v512
  %v570 = vmul.f32 %v297, %v514
  %v571 = vmul.f32 %v301, %v516
  %v572 = vmul.f32 %v303, %v518
  %v573 = vmul.f32 %v307, %v520
  %v574 = vmul.f32 %v309, %v522
  %v575 = vmul.f32 %v313, %v524
  %v576 = vmul.f32 %v315, %v526
  %v577 = vmul.f32 %v319, %v528
  %v578 = vmul.f32 %v321, %v530
  %v579 = vmul.f32 %v325, %v532
  %v580 = vmul.f32 %v327, %v534
  %v581 = vmul.f32 %v331, %v536
  %v582 = vmul.f32 %v333, %v538
  %v583 = vmul.f32 %v337, %v540
  %v584 = vmul.f32 %v339, %v542
  %v585 = vmul.f32 %v343, %v544
  %v586 = vmul.f32 %v345, %v546
  %v587 = vmul.f32 %v349, %v548
  %v588 = vmul.f32 %v351, %v550
  %v589 = vmul.f32 %v355, %v552
  %v590 = vmul.f32 %v357, %v554
  %v591 = vmul.f32 %v361, %v556
  %v592 = vmul.f32 %v363, %v558
  %v593 = vmul.f32 %v367, %v560
  %v594 = vmul.f32 %v369, %v562
  %v595 = vadd.f32 %v563, %v564
  %596 = vadd.xlane.f32.xlu0 %v595
  %v597 = vpop.xlane.xlu0 %596
  %v598 = vadd.f32 %v565, %v566
  %599 = vadd.xlane.f32.xlu0 %v598
  %v600 = vpop.xlane.xlu0 %599
  %v601 = vadd.f32 %v567, %v568
  %602 = vadd.xlane.f32.xlu0 %v601
  %v603 = vpop.xlane.xlu0 %602
  %v604 = vadd.f32 %v569, %v570
  %605 = vadd.xlane.f32.xlu0 %v604
  %v606 = vpop.xlane.xlu0 %605
  %v607 = vadd.f32 %v571, %v572
  %608 = vadd.xlane.f32.xlu0 %v607
  %v609 = vpop.xlane.xlu0 %608
  %v610 = vadd.f32 %v573, %v574
  %611 = vadd.xlane.f32.xlu0 %v610
  %v612 = vpop.xlane.xlu0 %611
  %v613 = vadd.f32 %v575, %v576
  %614 = vadd.xlane.f32.xlu0 %v613
  %v615 = vpop.xlane.xlu0 %614
  %v616 = vadd.f32 %v577, %v578
  %617 = vadd.xlane.f32.xlu0 %v616
  %v618 = vpop.xlane.xlu0 %617
  %v619 = vadd.f32 %v579, %v580
  %620 = vadd.xlane.f32.xlu0 %v619
  %v621 = vpop.xlane.xlu0 %620
  %v622 = vadd.f32 %v581, %v582
  %623 = vadd.xlane.f32.xlu0 %v622
  %v624 = vpop.xlane.xlu0 %623
  %v625 = vadd.f32 %v583, %v584
  %626 = vadd.xlane.f32.xlu0 %v625
  %v627 = vpop.xlane.xlu0 %626
  %v628 = vadd.f32 %v585, %v586
  %629 = vadd.xlane.f32.xlu0 %v628
  %v630 = vpop.xlane.xlu0 %629
  %v631 = vadd.f32 %v587, %v588
  %632 = vadd.xlane.f32.xlu0 %v631
  %v633 = vpop.xlane.xlu0 %632
  %v634 = vadd.f32 %v589, %v590
  %635 = vadd.xlane.f32.xlu0 %v634
  %v636 = vpop.xlane.xlu0 %635
  %v637 = vadd.f32 %v591, %v592
  %638 = vadd.xlane.f32.xlu0 %v637
  %v639 = vpop.xlane.xlu0 %638
  %v640 = vadd.f32 %v593, %v594
  %641 = vadd.xlane.f32.xlu0 %v640
  %v642 = vpop.xlane.xlu0 %641
  %s643 = scalar_lea.vmem %s0, 8
  %v644 = vld [vmem:[%s643] sm:$0xff]
  %v646 = vcombine.high %v644, %v644
  %v647 = vsel %vm205, %v644, 0
  %v649 = vsel %vm205, %v646, 0
  %651 = vmatprep.subr.mxu0 %v649
  %652 = vmatpush1.msra.mxu0 %v647
  %653 = vmatprep.subr.mxu0 0.0
  %654 = vmatpush1.msra.mxu0 0.0
  %655 = vmatprep.subr.mxu0 0.0
  %656 = vmatpush1.msra.mxu0 0.0
  %657 = vmatprep.subr.mxu0 0.0
  %658 = vmatpush1.msra.mxu0 0.0
  %659 = vmatprep.subr.mxu0 0.0
  %660 = vmatpush1.msra.mxu0 0.0
  %661 = vmatprep.subr.mxu0 0.0
  %662 = vmatpush1.msra.mxu0 0.0
  %663 = vmatprep.subr.mxu0 0.0
  %664 = vmatpush1.msra.mxu0 0.0
  %665 = vmatprep.subr.mxu0 0.0
  %666 = vmatpush1.msra.mxu0 0.0
  %667 = vmatprep.subr.mxu0 0.0
  %668 = vmatpush1.msra.mxu0 0.0
  %669 = vmatprep.subr.mxu0 0.0
  %670 = vmatpush1.msra.mxu0 0.0
  %671 = vmatprep.subr.mxu0 0.0
  %672 = vmatpush1.msra.mxu0 0.0
  %673 = vmatprep.subr.mxu0 0.0
  %674 = vmatpush1.msra.mxu0 0.0
  %675 = vmatprep.subr.mxu0 0.0
  %676 = vmatpush1.msra.mxu0 0.0
  %677 = vmatprep.subr.mxu0 0.0
  %678 = vmatpush1.msra.mxu0 0.0
  %679 = vmatprep.subr.mxu0 0.0
  %680 = vmatpush1.msra.mxu0 0.0
  %681 = vmatprep.subr.mxu0 0.0
  %682 = vmatpush1.msra.mxu0 0.0
  %683 = vmatprep.subr.mxu0 0.0
  %684 = vmatpush1.msra.mxu0 0.0
  %685 = vmatprep.subr.mxu0 0.0
  %686 = vmatpush1.msra.mxu0 0.0
  %687 = vmatprep.subr.mxu0 0.0
  %688 = vmatpush1.msra.mxu0 0.0
  %689 = vmatprep.subr.mxu0 0.0
  %690 = vmatpush1.msra.mxu0 0.0
  %691 = vmatprep.subr.mxu0 0.0
  %692 = vmatpush1.msra.mxu0 0.0
  %693 = vmatprep.subr.mxu0 0.0
  %694 = vmatpush1.msra.mxu0 0.0
  %695 = vmatprep.subr.mxu0 0.0
  %696 = vmatpush1.msra.mxu0 0.0
  %697 = vmatprep.subr.mxu0 0.0
  %698 = vmatpush1.msra.mxu0 0.0
  %699 = vmatprep.subr.mxu0 0.0
  %700 = vmatpush1.msra.mxu0 0.0
  %701 = vmatprep.subr.mxu0 0.0
  %702 = vmatpush1.msra.mxu0 0.0
  %703 = vmatprep.subr.mxu0 0.0
  %704 = vmatpush1.msra.mxu0 0.0
  %705 = vmatprep.subr.mxu0 0.0
  %706 = vmatpush1.msra.mxu0 0.0
  %707 = vmatprep.subr.mxu0 0.0
  %708 = vmatpush1.msra.mxu0 0.0
  %709 = vmatprep.subr.mxu0 0.0
  %710 = vmatpush1.msra.mxu0 0.0
  %711 = vmatprep.subr.mxu0 0.0
  %712 = vmatpush1.msra.mxu0 0.0
  %713 = vmatprep.subr.mxu0 0.0
  %714 = vmatpush1.msra.mxu0 0.0
  %715 = vmatprep.mubr.f32.mxu0 0.0
  %716 = vmatmul.mubr.f32.gmra.mrb[0].mxu0 %v158
  %v717 = vpop.f32.mrb[0].mxu0
  %v718 = vadd.f32 %v77, %v717
  %v719 = vpop.f32.mrb[0].mxu0
  %v720 = vadd.f32 %v77, %v719
  %721 = vmatprep.mubr.f32.mxu0 0.0
  %722 = vmatmul.mubr.f32.gmra.mrb[0].mxu0 %v161
  %v723 = vpop.f32.mrb[0].mxu0
  %v724 = vadd.f32 %v82, %v723
  %v725 = vpop.f32.mrb[0].mxu0
  %v726 = vadd.f32 %v82, %v725
  %727 = vmatprep.mubr.f32.mxu0 0.0
  %728 = vmatmul.mubr.f32.gmra.mrb[0].mxu0 %v164
  %v729 = vpop.f32.mrb[0].mxu0
  %v730 = vadd.f32 %v87, %v729
  %v731 = vpop.f32.mrb[0].mxu0
  %v732 = vadd.f32 %v87, %v731
  %733 = vmatprep.mubr.f32.mxu0 0.0
  %734 = vmatmul.mubr.f32.gmra.mrb[0].mxu0 %v167
  %v735 = vpop.f32.mrb[0].mxu0
  %v736 = vadd.f32 %v92, %v735
  %v737 = vpop.f32.mrb[0].mxu0
  %v738 = vadd.f32 %v92, %v737
  %739 = vmatprep.mubr.f32.mxu0 0.0
  %740 = vmatmul.mubr.f32.gmra.mrb[0].mxu0 %v170
  %v741 = vpop.f32.mrb[0].mxu0
  %v742 = vadd.f32 %v97, %v741
  %v743 = vpop.f32.mrb[0].mxu0
  %v744 = vadd.f32 %v97, %v743
  %745 = vmatprep.mubr.f32.mxu0 0.0
  %746 = vmatmul.mubr.f32.gmra.mrb[0].mxu0 %v173
  %v747 = vpop.f32.mrb[0].mxu0
  %v748 = vadd.f32 %v102, %v747
  %v749 = vpop.f32.mrb[0].mxu0
  %v750 = vadd.f32 %v102, %v749
  %751 = vmatprep.mubr.f32.mxu0 0.0
  %752 = vmatmul.mubr.f32.gmra.mrb[0].mxu0 %v176
  %v753 = vpop.f32.mrb[0].mxu0
  %v754 = vadd.f32 %v107, %v753
  %v755 = vpop.f32.mrb[0].mxu0
  %v756 = vadd.f32 %v107, %v755
  %757 = vmatprep.mubr.f32.mxu0 0.0
  %758 = vmatmul.mubr.f32.gmra.mrb[0].mxu0 %v179
  %v759 = vpop.f32.mrb[0].mxu0
  %v760 = vadd.f32 %v112, %v759
  %v761 = vpop.f32.mrb[0].mxu0
  %v762 = vadd.f32 %v112, %v761
  %763 = vmatprep.mubr.f32.mxu0 0.0
  %764 = vmatmul.mubr.f32.gmra.mrb[0].mxu0 %v182
  %v765 = vpop.f32.mrb[0].mxu0
  %v766 = vadd.f32 %v117, %v765
  %v767 = vpop.f32.mrb[0].mxu0
  %v768 = vadd.f32 %v117, %v767
  %769 = vmatprep.mubr.f32.mxu0 0.0
  %770 = vmatmul.mubr.f32.gmra.mrb[0].mxu0 %v185
  %v771 = vpop.f32.mrb[0].mxu0
  %v772 = vadd.f32 %v122, %v771
  %v773 = vpop.f32.mrb[0].mxu0
  %v774 = vadd.f32 %v122, %v773
  %775 = vmatprep.mubr.f32.mxu0 0.0
  %776 = vmatmul.mubr.f32.gmra.mrb[0].mxu0 %v188
  %v777 = vpop.f32.mrb[0].mxu0
  %v778 = vadd.f32 %v127, %v777
  %v779 = vpop.f32.mrb[0].mxu0
  %v780 = vadd.f32 %v127, %v779
  %781 = vmatprep.mubr.f32.mxu0 0.0
  %782 = vmatmul.mubr.f32.gmra.mrb[0].mxu0 %v191
  %v783 = vpop.f32.mrb[0].mxu0
  %v784 = vadd.f32 %v132, %v783
  %v785 = vpop.f32.mrb[0].mxu0
  %v786 = vadd.f32 %v132, %v785
  %787 = vmatprep.mubr.f32.mxu0 0.0
  %788 = vmatmul.mubr.f32.gmra.mrb[0].mxu0 %v194
  %v789 = vpop.f32.mrb[0].mxu0
  %v790 = vadd.f32 %v137, %v789
  %v791 = vpop.f32.mrb[0].mxu0
  %v792 = vadd.f32 %v137, %v791
  %793 = vmatprep.mubr.f32.mxu0 0.0
  %794 = vmatmul.mubr.f32.gmra.mrb[0].mxu0 %v197
  %v795 = vpop.f32.mrb[0].mxu0
  %v796 = vadd.f32 %v142, %v795
  %v797 = vpop.f32.mrb[0].mxu0
  %v798 = vadd.f32 %v142, %v797
  %799 = vmatprep.mubr.f32.mxu0 0.0
  %800 = vmatmul.mubr.f32.gmra.mrb[0].mxu0 %v200
  %v801 = vpop.f32.mrb[0].mxu0
  %v802 = vadd.f32 %v147, %v801
  %v803 = vpop.f32.mrb[0].mxu0
  %v804 = vadd.f32 %v147, %v803
  %805 = vmatprep.mubr.f32.mxu0 0.0
  %806 = vmatmul.mubr.f32.gmra.mrb[0].mxu0 %v203
  %v807 = vpop.f32.mrb[0].mxu0
  %v808 = vadd.f32 %v152, %v807
  %v809 = vpop.f32.mrb[0].mxu0
  %v810 = vadd.f32 %v152, %v809
  %811 = vdwg.mxu0
  %v812 = vxor.u32 %v718, 2147483648
  %v813 = vxor.u32 %v720, 2147483648
  %v814 = vxor.u32 %v724, 2147483648
  %v815 = vxor.u32 %v726, 2147483648
  %v816 = vxor.u32 %v730, 2147483648
  %v817 = vxor.u32 %v732, 2147483648
  %v818 = vxor.u32 %v736, 2147483648
  %v819 = vxor.u32 %v738, 2147483648
  %v820 = vxor.u32 %v742, 2147483648
  %v821 = vxor.u32 %v744, 2147483648
  %v822 = vxor.u32 %v748, 2147483648
  %v823 = vxor.u32 %v750, 2147483648
  %v824 = vxor.u32 %v754, 2147483648
  %v825 = vxor.u32 %v756, 2147483648
  %v826 = vxor.u32 %v760, 2147483648
  %v827 = vxor.u32 %v762, 2147483648
  %v828 = vxor.u32 %v766, 2147483648
  %v829 = vxor.u32 %v768, 2147483648
  %v830 = vxor.u32 %v772, 2147483648
  %v831 = vxor.u32 %v774, 2147483648
  %v832 = vxor.u32 %v778, 2147483648
  %v833 = vxor.u32 %v780, 2147483648
  %v834 = vxor.u32 %v784, 2147483648
  %v835 = vxor.u32 %v786, 2147483648
  %v836 = vxor.u32 %v790, 2147483648
  %v837 = vxor.u32 %v792, 2147483648
  %v838 = vxor.u32 %v796, 2147483648
  %v839 = vxor.u32 %v798, 2147483648
  %v840 = vxor.u32 %v802, 2147483648
  %v841 = vxor.u32 %v804, 2147483648
  %v842 = vxor.u32 %v808, 2147483648
  %v843 = vxor.u32 %v810, 2147483648
  %v844 = vmul.f32 %v812, 1.442695
  %v845 = vpow.pop %v844
  %v846 = vmul.f32 %v813, 1.442695
  %v847 = vpow.pop %v846
  %v848 = vmul.f32 %v814, 1.442695
  %v849 = vpow.pop %v848
  %v850 = vmul.f32 %v815, 1.442695
  %v851 = vpow.pop %v850
  %v852 = vmul.f32 %v816, 1.442695
  %v853 = vpow.pop %v852
  %v854 = vmul.f32 %v817, 1.442695
  %v855 = vpow.pop %v854
  %v856 = vmul.f32 %v818, 1.442695
  %v857 = vpow.pop %v856
  %v858 = vmul.f32 %v819, 1.442695
  %v859 = vpow.pop %v858
  %v860 = vmul.f32 %v820, 1.442695
  %v861 = vpow.pop %v860
  %v862 = vmul.f32 %v821, 1.442695
  %v863 = vpow.pop %v862
  %v864 = vmul.f32 %v822, 1.442695
  %v865 = vpow.pop %v864
  %v866 = vmul.f32 %v823, 1.442695
  %v867 = vpow.pop %v866
  %v868 = vmul.f32 %v824, 1.442695
  %v869 = vpow.pop %v868
  %v870 = vmul.f32 %v825, 1.442695
  %v871 = vpow.pop %v870
  %v872 = vmul.f32 %v826, 1.442695
  %v873 = vpow.pop %v872
  %v874 = vmul.f32 %v827, 1.442695
  %v875 = vpow.pop %v874
  %v876 = vmul.f32 %v828, 1.442695
  %v877 = vpow.pop %v876
  %v878 = vmul.f32 %v829, 1.442695
  %v879 = vpow.pop %v878
  %v880 = vmul.f32 %v830, 1.442695
  %v881 = vpow.pop %v880
  %v882 = vmul.f32 %v831, 1.442695
  %v883 = vpow.pop %v882
  %v884 = vmul.f32 %v832, 1.442695
  %v885 = vpow.pop %v884
  %v886 = vmul.f32 %v833, 1.442695
  %v887 = vpow.pop %v886
  %v888 = vmul.f32 %v834, 1.442695
  %v889 = vpow.pop %v888
  %v890 = vmul.f32 %v835, 1.442695
  %v891 = vpow.pop %v890
  %v892 = vmul.f32 %v836, 1.442695
  %v893 = vpow.pop %v892
  %v894 = vmul.f32 %v837, 1.442695
  %v895 = vpow.pop %v894
  %v896 = vmul.f32 %v838, 1.442695
  %v897 = vpow.pop %v896
  %v898 = vmul.f32 %v839, 1.442695
  %v899 = vpow.pop %v898
  %v900 = vmul.f32 %v840, 1.442695
  %v901 = vpow.pop %v900
  %v902 = vmul.f32 %v841, 1.442695
  %v903 = vpow.pop %v902
  %v904 = vmul.f32 %v842, 1.442695
  %v905 = vpow.pop %v904
  %v906 = vmul.f32 %v843, 1.442695
  %v907 = vpow.pop %v906
  %v908 = vadd.f32 %v845, 1.0
  %v909 = vadd.f32 %v847, 1.0
  %v910 = vadd.f32 %v849, 1.0
  %v911 = vadd.f32 %v851, 1.0
  %v912 = vadd.f32 %v853, 1.0
  %v913 = vadd.f32 %v855, 1.0
  %v914 = vadd.f32 %v857, 1.0
  %v915 = vadd.f32 %v859, 1.0
  %v916 = vadd.f32 %v861, 1.0
  %v917 = vadd.f32 %v863, 1.0
  %v918 = vadd.f32 %v865, 1.0
  %v919 = vadd.f32 %v867, 1.0
  %v920 = vadd.f32 %v869, 1.0
  %v921 = vadd.f32 %v871, 1.0
  %v922 = vadd.f32 %v873, 1.0
  %v923 = vadd.f32 %v875, 1.0
  %v924 = vadd.f32 %v877, 1.0
  %v925 = vadd.f32 %v879, 1.0
  %v926 = vadd.f32 %v881, 1.0
  %v927 = vadd.f32 %v883, 1.0
  %v928 = vadd.f32 %v885, 1.0
  %v929 = vadd.f32 %v887, 1.0
  %v930 = vadd.f32 %v889, 1.0
  %v931 = vadd.f32 %v891, 1.0
  %v932 = vadd.f32 %v893, 1.0
  %v933 = vadd.f32 %v895, 1.0
  %v934 = vadd.f32 %v897, 1.0
  %v935 = vadd.f32 %v899, 1.0
  %v936 = vadd.f32 %v901, 1.0
  %v937 = vadd.f32 %v903, 1.0
  %v938 = vadd.f32 %v905, 1.0
  %v939 = vadd.f32 %v907, 1.0
  %v940 = vrcp.pop %v908
  %v941 = vmul.f32 1.0, %v940
  %v942 = vrcp.pop %v909
  %v943 = vmul.f32 1.0, %v942
  %v944 = vrcp.pop %v910
  %v945 = vmul.f32 1.0, %v944
  %v946 = vrcp.pop %v911
  %v947 = vmul.f32 1.0, %v946
  %v948 = vrcp.pop %v912
  %v949 = vmul.f32 1.0, %v948
  %v950 = vrcp.pop %v913
  %v951 = vmul.f32 1.0, %v950
  %v952 = vrcp.pop %v914
  %v953 = vmul.f32 1.0, %v952
  %v954 = vrcp.pop %v915
  %v955 = vmul.f32 1.0, %v954
  %v956 = vrcp.pop %v916
  %v957 = vmul.f32 1.0, %v956
  %v958 = vrcp.pop %v917
  %v959 = vmul.f32 1.0, %v958
  %v960 = vrcp.pop %v918
  %v961 = vmul.f32 1.0, %v960
  %v962 = vrcp.pop %v919
  %v963 = vmul.f32 1.0, %v962
  %v964 = vrcp.pop %v920
  %v965 = vmul.f32 1.0, %v964
  %v966 = vrcp.pop %v921
  %v967 = vmul.f32 1.0, %v966
  %v968 = vrcp.pop %v922
  %v969 = vmul.f32 1.0, %v968
  %v970 = vrcp.pop %v923
  %v971 = vmul.f32 1.0, %v970
  %v972 = vrcp.pop %v924
  %v973 = vmul.f32 1.0, %v972
  %v974 = vrcp.pop %v925
  %v975 = vmul.f32 1.0, %v974
  %v976 = vrcp.pop %v926
  %v977 = vmul.f32 1.0, %v976
  %v978 = vrcp.pop %v927
  %v979 = vmul.f32 1.0, %v978
  %v980 = vrcp.pop %v928
  %v981 = vmul.f32 1.0, %v980
  %v982 = vrcp.pop %v929
  %v983 = vmul.f32 1.0, %v982
  %v984 = vrcp.pop %v930
  %v985 = vmul.f32 1.0, %v984
  %v986 = vrcp.pop %v931
  %v987 = vmul.f32 1.0, %v986
  %v988 = vrcp.pop %v932
  %v989 = vmul.f32 1.0, %v988
  %v990 = vrcp.pop %v933
  %v991 = vmul.f32 1.0, %v990
  %v992 = vrcp.pop %v934
  %v993 = vmul.f32 1.0, %v992
  %v994 = vrcp.pop %v935
  %v995 = vmul.f32 1.0, %v994
  %v996 = vrcp.pop %v936
  %v997 = vmul.f32 1.0, %v996
  %v998 = vrcp.pop %v937
  %v999 = vmul.f32 1.0, %v998
  %v1000 = vrcp.pop %v938
  %v1001 = vmul.f32 1.0, %v1000
  %v1002 = vrcp.pop %v939
  %v1003 = vmul.f32 1.0, %v1002
  %v1004 = vmul.f32 %v718, %v941
  %v1005 = vmul.f32 %v720, %v943
  %v1006 = vmul.f32 %v724, %v945
  %v1007 = vmul.f32 %v726, %v947
  %v1008 = vmul.f32 %v730, %v949
  %v1009 = vmul.f32 %v732, %v951
  %v1010 = vmul.f32 %v736, %v953
  %v1011 = vmul.f32 %v738, %v955
  %v1012 = vmul.f32 %v742, %v957
  %v1013 = vmul.f32 %v744, %v959
  %v1014 = vmul.f32 %v748, %v961
  %v1015 = vmul.f32 %v750, %v963
  %v1016 = vmul.f32 %v754, %v965
  %v1017 = vmul.f32 %v756, %v967
  %v1018 = vmul.f32 %v760, %v969
  %v1019 = vmul.f32 %v762, %v971
  %v1020 = vmul.f32 %v766, %v973
  %v1021 = vmul.f32 %v768, %v975
  %v1022 = vmul.f32 %v772, %v977
  %v1023 = vmul.f32 %v774, %v979
  %v1024 = vmul.f32 %v778, %v981
  %v1025 = vmul.f32 %v780, %v983
  %v1026 = vmul.f32 %v784, %v985
  %v1027 = vmul.f32 %v786, %v987
  %v1028 = vmul.f32 %v790, %v989
  %v1029 = vmul.f32 %v792, %v991
  %v1030 = vmul.f32 %v796, %v993
  %v1031 = vmul.f32 %v798, %v995
  %v1032 = vmul.f32 %v802, %v997
  %v1033 = vmul.f32 %v804, %v999
  %v1034 = vmul.f32 %v808, %v1001
  %v1035 = vmul.f32 %v810, %v1003
  %v1036 = vadd.f32 %v1004, %v1005
  %1037 = vadd.xlane.f32.xlu0 %v1036
  %v1038 = vpop.xlane.xlu0 %1037
  %v1039 = vadd.f32 %v1006, %v1007
  %1040 = vadd.xlane.f32.xlu0 %v1039
  %v1041 = vpop.xlane.xlu0 %1040
  %v1042 = vadd.f32 %v1008, %v1009
  %1043 = vadd.xlane.f32.xlu0 %v1042
  %v1044 = vpop.xlane.xlu0 %1043
  %v1045 = vadd.f32 %v1010, %v1011
  %1046 = vadd.xlane.f32.xlu0 %v1045
  %v1047 = vpop.xlane.xlu0 %1046
  %v1048 = vadd.f32 %v1012, %v1013
  %1049 = vadd.xlane.f32.xlu0 %v1048
  %v1050 = vpop.xlane.xlu0 %1049
  %v1051 = vadd.f32 %v1014, %v1015
  %1052 = vadd.xlane.f32.xlu0 %v1051
  %v1053 = vpop.xlane.xlu0 %1052
  %v1054 = vadd.f32 %v1016, %v1017
  %1055 = vadd.xlane.f32.xlu0 %v1054
  %v1056 = vpop.xlane.xlu0 %1055
  %v1057 = vadd.f32 %v1018, %v1019
  %1058 = vadd.xlane.f32.xlu0 %v1057
  %v1059 = vpop.xlane.xlu0 %1058
  %v1060 = vadd.f32 %v1020, %v1021
  %1061 = vadd.xlane.f32.xlu0 %v1060
  %v1062 = vpop.xlane.xlu0 %1061
  %v1063 = vadd.f32 %v1022, %v1023
  %1064 = vadd.xlane.f32.xlu0 %v1063
  %v1065 = vpop.xlane.xlu0 %1064
  %v1066 = vadd.f32 %v1024, %v1025
  %1067 = vadd.xlane.f32.xlu0 %v1066
  %v1068 = vpop.xlane.xlu0 %1067
  %v1069 = vadd.f32 %v1026, %v1027
  %1070 = vadd.xlane.f32.xlu0 %v1069
  %v1071 = vpop.xlane.xlu0 %1070
  %v1072 = vadd.f32 %v1028, %v1029
  %1073 = vadd.xlane.f32.xlu0 %v1072
  %v1074 = vpop.xlane.xlu0 %1073
  %v1075 = vadd.f32 %v1030, %v1031
  %1076 = vadd.xlane.f32.xlu0 %v1075
  %v1077 = vpop.xlane.xlu0 %1076
  %v1078 = vadd.f32 %v1032, %v1033
  %1079 = vadd.xlane.f32.xlu0 %v1078
  %v1080 = vpop.xlane.xlu0 %1079
  %v1081 = vadd.f32 %v1034, %v1035
  %1082 = vadd.xlane.f32.xlu0 %v1081
  %v1083 = vpop.xlane.xlu0 %1082
  %v1084 = vlaneseq
  %v1085 = vand.u32 %v1084, 127
  %vm1086 = vcmp.eq.s32.totalorder %v1085, 0
  %v1087 = vsel %vm1086, %v597, 0.0
  %v1088 = vsel %vm1086, %v600, 0.0
  %v1089 = vsel %vm1086, %v603, 0.0
  %v1090 = vsel %vm1086, %v606, 0.0
  %v1091 = vsel %vm1086, %v609, 0.0
  %v1092 = vsel %vm1086, %v612, 0.0
  %v1093 = vsel %vm1086, %v615, 0.0
  %v1094 = vsel %vm1086, %v618, 0.0
  %v1095 = vsel %vm1086, %v621, 0.0
  %v1096 = vsel %vm1086, %v624, 0.0
  %v1097 = vsel %vm1086, %v627, 0.0
  %v1098 = vsel %vm1086, %v630, 0.0
  %v1099 = vsel %vm1086, %v633, 0.0
  %v1100 = vsel %vm1086, %v636, 0.0
  %v1101 = vsel %vm1086, %v639, 0.0
  %v1102 = vsel %vm1086, %v642, 0.0
  %vm1103 = vcmp.eq.s32.totalorder %v1085, 1
  %v1104 = vsel %vm1103, %v1038, %v1087
  %v1105 = vsel %vm1103, %v1041, %v1088
  %v1106 = vsel %vm1103, %v1044, %v1089
  %v1107 = vsel %vm1103, %v1047, %v1090
  %v1108 = vsel %vm1103, %v1050, %v1091
  %v1109 = vsel %vm1103, %v1053, %v1092
  %v1110 = vsel %vm1103, %v1056, %v1093
  %v1111 = vsel %vm1103, %v1059, %v1094
  %v1112 = vsel %vm1103, %v1062, %v1095
  %v1113 = vsel %vm1103, %v1065, %v1096
  %v1114 = vsel %vm1103, %v1068, %v1097
  %v1115 = vsel %vm1103, %v1071, %v1098
  %v1116 = vsel %vm1103, %v1074, %v1099
  %v1117 = vsel %vm1103, %v1077, %v1100
  %v1118 = vsel %vm1103, %v1080, %v1101
  %v1119 = vsel %vm1103, %v1083, %v1102
  %v1120 = vld [vmem:[#allocation2] sm:$0xff]
  %v1121 = vld [vmem:[#allocation2 + $0x8] sm:$0xff]
  %v1122 = vld [vmem:[#allocation2 + $0x10] sm:$0xff]
  %v1123 = vld [vmem:[#allocation2 + $0x18] sm:$0xff]
  %v1124 = vld [vmem:[#allocation2 + $0x20] sm:$0xff]
  %v1125 = vld [vmem:[#allocation2 + $0x28] sm:$0xff]
  %v1126 = vld [vmem:[#allocation2 + $0x30] sm:$0xff]
  %v1127 = vld [vmem:[#allocation2 + $0x38] sm:$0xff]
  %v1128 = vld [vmem:[#allocation2 + $0x40] sm:$0xff]
  %v1129 = vld [vmem:[#allocation2 + $0x48] sm:$0xff]
  %v1130 = vld [vmem:[#allocation2 + $0x50] sm:$0xff]
  %v1131 = vld [vmem:[#allocation2 + $0x58] sm:$0xff]
  %v1132 = vld [vmem:[#allocation2 + $0x60] sm:$0xff]
  %v1133 = vld [vmem:[#allocation2 + $0x68] sm:$0xff]
  %v1134 = vld [vmem:[#allocation2 + $0x70] sm:$0xff]
  %v1135 = vld [vmem:[#allocation2 + $0x78] sm:$0xff]
  %v1136 = vadd.f32 %v1120, %v1104
  %v1137 = vadd.f32 %v1121, %v1105
  %v1138 = vadd.f32 %v1122, %v1106
  %v1139 = vadd.f32 %v1123, %v1107
  %v1140 = vadd.f32 %v1124, %v1108
  %v1141 = vadd.f32 %v1125, %v1109
  %v1142 = vadd.f32 %v1126, %v1110
  %v1143 = vadd.f32 %v1127, %v1111
  %v1144 = vadd.f32 %v1128, %v1112
  %v1145 = vadd.f32 %v1129, %v1113
  %v1146 = vadd.f32 %v1130, %v1114
  %v1147 = vadd.f32 %v1131, %v1115
  %v1148 = vadd.f32 %v1132, %v1116
  %v1149 = vadd.f32 %v1133, %v1117
  %v1150 = vadd.f32 %v1134, %v1118
  %v1151 = vadd.f32 %v1135, %v1119
  %vm1152 = vcmask 15360
  %1153 = vst.msk [vmem:[#allocation2] sm:$0xff] %vm1152, %v1136
  %1154 = vst.msk [vmem:[#allocation2 + $0x8] sm:$0xff] %vm1152, %v1137
  %1155 = vst.msk [vmem:[#allocation2 + $0x10] sm:$0xff] %vm1152, %v1138
  %1156 = vst.msk [vmem:[#allocation2 + $0x18] sm:$0xff] %vm1152, %v1139
  %1157 = vst.msk [vmem:[#allocation2 + $0x20] sm:$0xff] %vm1152, %v1140
  %1158 = vst.msk [vmem:[#allocation2 + $0x28] sm:$0xff] %vm1152, %v1141
  %1159 = vst.msk [vmem:[#allocation2 + $0x30] sm:$0xff] %vm1152, %v1142
  %1160 = vst.msk [vmem:[#allocation2 + $0x38] sm:$0xff] %vm1152, %v1143
  %1161 = vst.msk [vmem:[#allocation2 + $0x40] sm:$0xff] %vm1152, %v1144
  %1162 = vst.msk [vmem:[#allocation2 + $0x48] sm:$0xff] %vm1152, %v1145
  %1163 = vst.msk [vmem:[#allocation2 + $0x50] sm:$0xff] %vm1152, %v1146
  %1164 = vst.msk [vmem:[#allocation2 + $0x58] sm:$0xff] %vm1152, %v1147
  %1165 = vst.msk [vmem:[#allocation2 + $0x60] sm:$0xff] %vm1152, %v1148
  %1166 = vst.msk [vmem:[#allocation2 + $0x68] sm:$0xff] %vm1152, %v1149
  %1167 = vst.msk [vmem:[#allocation2 + $0x70] sm:$0xff] %vm1152, %v1150
  %1168 = vst.msk [vmem:[#allocation2 + $0x78] sm:$0xff] %vm1152, %v1151
  // Predicated region
  $region26: #{tpu_custom_call.1} parent=0 // pred_check
    %p1169 = pneg %p20
  $region27: #{tpu_custom_call.1} parent=0 // pred_check_branch
    %1171 = sbr.rel (%p1169) target = $region29
  $region28: #{tpu_custom_call.1} parent=0 // pred_region
    %v1172 = vld [vmem:[#allocation2] sm:$0xff]
    %v1173 = vld [vmem:[#allocation2 + $0x8] sm:$0xff]
    %v1174 = vld [vmem:[#allocation2 + $0x10] sm:$0xff]
    %v1175 = vld [vmem:[#allocation2 + $0x18] sm:$0xff]
    %v1176 = vld [vmem:[#allocation2 + $0x20] sm:$0xff]
    %v1177 = vld [vmem:[#allocation2 + $0x28] sm:$0xff]
    %v1178 = vld [vmem:[#allocation2 + $0x30] sm:$0xff]
    %v1179 = vld [vmem:[#allocation2 + $0x38] sm:$0xff]
    %v1180 = vld [vmem:[#allocation2 + $0x40] sm:$0xff]
    %v1181 = vld [vmem:[#allocation2 + $0x48] sm:$0xff]
    %v1182 = vld [vmem:[#allocation2 + $0x50] sm:$0xff]
    %v1183 = vld [vmem:[#allocation2 + $0x58] sm:$0xff]
    %v1184 = vld [vmem:[#allocation2 + $0x60] sm:$0xff]
    %v1185 = vld [vmem:[#allocation2 + $0x68] sm:$0xff]
    %v1186 = vld [vmem:[#allocation2 + $0x70] sm:$0xff]
    %v1187 = vld [vmem:[#allocation2 + $0x78] sm:$0xff]
    %v1188 = vmul.f32 %v1172, 0.00390625
    %v1189 = vmul.f32 %v1173, 0.00390625
    %v1190 = vmul.f32 %v1174, 0.00390625
    %v1191 = vmul.f32 %v1175, 0.00390625
    %v1192 = vmul.f32 %v1176, 0.00390625
    %v1193 = vmul.f32 %v1177, 0.00390625
    %v1194 = vmul.f32 %v1178, 0.00390625
    %v1195 = vmul.f32 %v1179, 0.00390625
    %v1196 = vmul.f32 %v1180, 0.00390625
    %v1197 = vmul.f32 %v1181, 0.00390625
    %v1198 = vmul.f32 %v1182, 0.00390625
    %v1199 = vmul.f32 %v1183, 0.00390625
    %v1200 = vmul.f32 %v1184, 0.00390625
    %v1201 = vmul.f32 %v1185, 0.00390625
    %v1202 = vmul.f32 %v1186, 0.00390625
    %v1203 = vmul.f32 %v1187, 0.00390625
    %v1204 = vsel %vm1152, %v1188, 0.0
    %v1205 = vsel %vm1152, %v1189, 0.0
    %v1206 = vadd.f32 %v1204, %v1205
    %v1207 = vsel %vm1152, %v1190, 0.0
    %v1208 = vadd.f32 %v1206, %v1207
    %v1209 = vsel %vm1152, %v1191, 0.0
    %v1210 = vadd.f32 %v1208, %v1209
    %v1211 = vsel %vm1152, %v1192, 0.0
    %v1212 = vadd.f32 %v1210, %v1211
    %v1213 = vsel %vm1152, %v1193, 0.0
    %v1214 = vadd.f32 %v1212, %v1213
    %v1215 = vsel %vm1152, %v1194, 0.0
    %v1216 = vadd.f32 %v1214, %v1215
    %v1217 = vsel %vm1152, %v1195, 0.0
    %v1218 = vadd.f32 %v1216, %v1217
    %v1219 = vsel %vm1152, %v1196, 0.0
    %v1220 = vadd.f32 %v1218, %v1219
    %v1221 = vsel %vm1152, %v1197, 0.0
    %v1222 = vadd.f32 %v1220, %v1221
    %v1223 = vsel %vm1152, %v1198, 0.0
    %v1224 = vadd.f32 %v1222, %v1223
    %v1225 = vsel %vm1152, %v1199, 0.0
    %v1226 = vadd.f32 %v1224, %v1225
    %v1227 = vsel %vm1152, %v1200, 0.0
    %v1228 = vadd.f32 %v1226, %v1227
    %v1229 = vsel %vm1152, %v1201, 0.0
    %v1230 = vadd.f32 %v1228, %v1229
    %v1231 = vsel %vm1152, %v1202, 0.0
    %v1232 = vadd.f32 %v1230, %v1231
    %v1233 = vsel %vm1152, %v1203, 0.0
    %v1234 = vadd.f32 %v1232, %v1233
    %v1235 = vrot.slane %v1234, 4
    %v1236 = vadd.f32 %v1234, %v1235
    %v1237 = vrot.slane %v1236, 2
    %v1238 = vadd.f32 %v1236, %v1237
    %v1239 = vrot.slane %v1238, 1
    %v1240 = vadd.f32 %v1238, %v1239
    %v1241 = vrcp.pop 128.0
    %v1242 = vmul.f32 %v1240, %v1241
    %v1243 = vsub.f32 %v1188, %v1242
    %v1244 = vsub.f32 %v1189, %v1242
    %v1245 = vsub.f32 %v1190, %v1242
    %v1246 = vsub.f32 %v1191, %v1242
    %v1247 = vsub.f32 %v1192, %v1242
    %v1248 = vsub.f32 %v1193, %v1242
    %v1249 = vsub.f32 %v1194, %v1242
    %v1250 = vsub.f32 %v1195, %v1242
    %v1251 = vsub.f32 %v1196, %v1242
    %v1252 = vsub.f32 %v1197, %v1242
    %v1253 = vsub.f32 %v1198, %v1242
    %v1254 = vsub.f32 %v1199, %v1242
    %v1255 = vsub.f32 %v1200, %v1242
    %v1256 = vsub.f32 %v1201, %v1242
    %v1257 = vsub.f32 %v1202, %v1242
    %v1258 = vsub.f32 %v1203, %v1242
    %v1259 = vmul.f32 %v1243, %v1243
    %v1260 = vmul.f32 %v1244, %v1244
    %v1261 = vmul.f32 %v1245, %v1245
    %v1262 = vmul.f32 %v1246, %v1246
    %v1263 = vmul.f32 %v1247, %v1247
    %v1264 = vmul.f32 %v1248, %v1248
    %v1265 = vmul.f32 %v1249, %v1249
    %v1266 = vmul.f32 %v1250, %v1250
    %v1267 = vmul.f32 %v1251, %v1251
    %v1268 = vmul.f32 %v1252, %v1252
    %v1269 = vmul.f32 %v1253, %v1253
    %v1270 = vmul.f32 %v1254, %v1254
    %v1271 = vmul.f32 %v1255, %v1255
    %v1272 = vmul.f32 %v1256, %v1256
    %v1273 = vmul.f32 %v1257, %v1257
    %v1274 = vmul.f32 %v1258, %v1258
    %v1275 = vsel %vm1152, %v1259, 0.0
    %v1276 = vsel %vm1152, %v1260, 0.0
    %v1277 = vadd.f32 %v1275, %v1276
    %v1278 = vsel %vm1152, %v1261, 0.0
    %v1279 = vadd.f32 %v1277, %v1278
    %v1280 = vsel %vm1152, %v1262, 0.0
    %v1281 = vadd.f32 %v1279, %v1280
    %v1282 = vsel %vm1152, %v1263, 0.0
    %v1283 = vadd.f32 %v1281, %v1282
    %v1284 = vsel %vm1152, %v1264, 0.0
    %v1285 = vadd.f32 %v1283, %v1284
    %v1286 = vsel %vm1152, %v1265, 0.0
    %v1287 = vadd.f32 %v1285, %v1286
    %v1288 = vsel %vm1152, %v1266, 0.0
    %v1289 = vadd.f32 %v1287, %v1288
    %v1290 = vsel %vm1152, %v1267, 0.0
    %v1291 = vadd.f32 %v1289, %v1290
    %v1292 = vsel %vm1152, %v1268, 0.0
    %v1293 = vadd.f32 %v1291, %v1292
    %v1294 = vsel %vm1152, %v1269, 0.0
    %v1295 = vadd.f32 %v1293, %v1294
    %v1296 = vsel %vm1152, %v1270, 0.0
    %v1297 = vadd.f32 %v1295, %v1296
    %v1298 = vsel %vm1152, %v1271, 0.0
    %v1299 = vadd.f32 %v1297, %v1298
    %v1300 = vsel %vm1152, %v1272, 0.0
    %v1301 = vadd.f32 %v1299, %v1300
    %v1302 = vsel %vm1152, %v1273, 0.0
    %v1303 = vadd.f32 %v1301, %v1302
    %v1304 = vsel %vm1152, %v1274, 0.0
    %v1305 = vadd.f32 %v1303, %v1304
    %v1306 = vrot.slane %v1305, 4
    %v1307 = vadd.f32 %v1305, %v1306
    %v1308 = vrot.slane %v1307, 2
    %v1309 = vadd.f32 %v1307, %v1308
    %v1310 = vrot.slane %v1309, 1
    %v1311 = vadd.f32 %v1309, %v1310
    %v1312 = vmul.f32 %v1311, %v1241
    %v1313 = vadd.f32 %v1312, 1e-05
    %v1314 = vrsqrt.pop %v1313
    %v1315 = vmul.f32 %v1243, %v1314
    %v1316 = vmul.f32 %v1244, %v1314
    %v1317 = vmul.f32 %v1245, %v1314
    %v1318 = vmul.f32 %v1246, %v1314
    %v1319 = vmul.f32 %v1247, %v1314
    %v1320 = vmul.f32 %v1248, %v1314
    %v1321 = vmul.f32 %v1249, %v1314
    %v1322 = vmul.f32 %v1250, %v1314
    %v1323 = vmul.f32 %v1251, %v1314
    %v1324 = vmul.f32 %v1252, %v1314
    %v1325 = vmul.f32 %v1253, %v1314
    %v1326 = vmul.f32 %v1254, %v1314
    %v1327 = vmul.f32 %v1255, %v1314
    %v1328 = vmul.f32 %v1256, %v1314
    %v1329 = vmul.f32 %v1257, %v1314
    %v1330 = vmul.f32 %v1258, %v1314
    %v1331 = vld [vmem:[%s3] sm:$0xff]
    %v1332 = vld [vmem:[%s3 + $0x8] sm:$0xff]
    %v1333 = vld [vmem:[%s3 + $0x10] sm:$0xff]
    %v1334 = vld [vmem:[%s3 + $0x18] sm:$0xff]
    %v1335 = vld [vmem:[%s3 + $0x20] sm:$0xff]
    %v1336 = vld [vmem:[%s3 + $0x28] sm:$0xff]
    %v1337 = vld [vmem:[%s3 + $0x30] sm:$0xff]
    %v1338 = vld [vmem:[%s3 + $0x38] sm:$0xff]
    %v1339 = vld [vmem:[%s3 + $0x40] sm:$0xff]
    %v1340 = vld [vmem:[%s3 + $0x48] sm:$0xff]
    %v1341 = vld [vmem:[%s3 + $0x50] sm:$0xff]
    %v1342 = vld [vmem:[%s3 + $0x58] sm:$0xff]
    %v1343 = vld [vmem:[%s3 + $0x60] sm:$0xff]
    %v1344 = vld [vmem:[%s3 + $0x68] sm:$0xff]
    %v1345 = vld [vmem:[%s3 + $0x70] sm:$0xff]
    %v1346 = vld [vmem:[%s3 + $0x78] sm:$0xff]
    %1348 = vset.pattern.permute.xlu0 0
    %1349 = vperm.xlu0 %1348, %v1331
    %v1350 = vpop.permute.xlu0 %1349
    %1353 = vset.pattern.permute.xlu0 0
    %1354 = vperm.xlu0 %1353, %v1332
    %v1355 = vpop.permute.xlu0 %1354
    %1358 = vset.pattern.permute.xlu0 0
    %1359 = vperm.xlu0 %1358, %v1333
    %v1360 = vpop.permute.xlu0 %1359
    %1363 = vset.pattern.permute.xlu0 0
    %1364 = vperm.xlu0 %1363, %v1334
    %v1365 = vpop.permute.xlu0 %1364
    %1368 = vset.pattern.permute.xlu0 0
    %1369 = vperm.xlu0 %1368, %v1335
    %v1370 = vpop.permute.xlu0 %1369
    %1373 = vset.pattern.permute.xlu0 0
    %1374 = vperm.xlu0 %1373, %v1336
    %v1375 = vpop.permute.xlu0 %1374
    %1378 = vset.pattern.permute.xlu0 0
    %1379 = vperm.xlu0 %1378, %v1337
    %v1380 = vpop.permute.xlu0 %1379
    %1383 = vset.pattern.permute.xlu0 0
    %1384 = vperm.xlu0 %1383, %v1338
    %v1385 = vpop.permute.xlu0 %1384
    %1388 = vset.pattern.permute.xlu0 0
    %1389 = vperm.xlu0 %1388, %v1339
    %v1390 = vpop.permute.xlu0 %1389
    %1393 = vset.pattern.permute.xlu0 0
    %1394 = vperm.xlu0 %1393, %v1340
    %v1395 = vpop.permute.xlu0 %1394
    %1398 = vset.pattern.permute.xlu0 0
    %1399 = vperm.xlu0 %1398, %v1341
    %v1400 = vpop.permute.xlu0 %1399
    %1403 = vset.pattern.permute.xlu0 0
    %1404 = vperm.xlu0 %1403, %v1342
    %v1405 = vpop.permute.xlu0 %1404
    %1408 = vset.pattern.permute.xlu0 0
    %1409 = vperm.xlu0 %1408, %v1343
    %v1410 = vpop.permute.xlu0 %1409
    %1413 = vset.pattern.permute.xlu0 0
    %1414 = vperm.xlu0 %1413, %v1344
    %v1415 = vpop.permute.xlu0 %1414
    %1418 = vset.pattern.permute.xlu0 0
    %1419 = vperm.xlu0 %1418, %v1345
    %v1420 = vpop.permute.xlu0 %1419
    %1423 = vset.pattern.permute.xlu0 0
    %1424 = vperm.xlu0 %1423, %v1346
    %v1425 = vpop.permute.xlu0 %1424
    %v1427 = vmul.f32 %v1315, %v1350
    %v1428 = vmul.f32 %v1316, %v1355
    %v1429 = vmul.f32 %v1317, %v1360
    %v1430 = vmul.f32 %v1318, %v1365
    %v1431 = vmul.f32 %v1319, %v1370
    %v1432 = vmul.f32 %v1320, %v1375
    %v1433 = vmul.f32 %v1321, %v1380
    %v1434 = vmul.f32 %v1322, %v1385
    %v1435 = vmul.f32 %v1323, %v1390
    %v1436 = vmul.f32 %v1324, %v1395
    %v1437 = vmul.f32 %v1325, %v1400
    %v1438 = vmul.f32 %v1326, %v1405
    %v1439 = vmul.f32 %v1327, %v1410
    %v1440 = vmul.f32 %v1328, %v1415
    %v1441 = vmul.f32 %v1329, %v1420
    %v1442 = vmul.f32 %v1330, %v1425
    %v1443 = vld [vmem:[%s4] sm:$0xff]
    %v1444 = vld [vmem:[%s4 + $0x8] sm:$0xff]
    %v1445 = vld [vmem:[%s4 + $0x10] sm:$0xff]
    %v1446 = vld [vmem:[%s4 + $0x18] sm:$0xff]
    %v1447 = vld [vmem:[%s4 + $0x20] sm:$0xff]
    %v1448 = vld [vmem:[%s4 + $0x28] sm:$0xff]
    %v1449 = vld [vmem:[%s4 + $0x30] sm:$0xff]
    %v1450 = vld [vmem:[%s4 + $0x38] sm:$0xff]
    %v1451 = vld [vmem:[%s4 + $0x40] sm:$0xff]
    %v1452 = vld [vmem:[%s4 + $0x48] sm:$0xff]
    %v1453 = vld [vmem:[%s4 + $0x50] sm:$0xff]
    %v1454 = vld [vmem:[%s4 + $0x58] sm:$0xff]
    %v1455 = vld [vmem:[%s4 + $0x60] sm:$0xff]
    %v1456 = vld [vmem:[%s4 + $0x68] sm:$0xff]
    %v1457 = vld [vmem:[%s4 + $0x70] sm:$0xff]
    %v1458 = vld [vmem:[%s4 + $0x78] sm:$0xff]
    %1460 = vset.pattern.permute.xlu0 0
    %1461 = vperm.xlu0 %1460, %v1443
    %v1462 = vpop.permute.xlu0 %1461
    %1465 = vset.pattern.permute.xlu0 0
    %1466 = vperm.xlu0 %1465, %v1444
    %v1467 = vpop.permute.xlu0 %1466
    %1470 = vset.pattern.permute.xlu0 0
    %1471 = vperm.xlu0 %1470, %v1445
    %v1472 = vpop.permute.xlu0 %1471
    %1475 = vset.pattern.permute.xlu0 0
    %1476 = vperm.xlu0 %1475, %v1446
    %v1477 = vpop.permute.xlu0 %1476
    %1480 = vset.pattern.permute.xlu0 0
    %1481 = vperm.xlu0 %1480, %v1447
    %v1482 = vpop.permute.xlu0 %1481
    %1485 = vset.pattern.permute.xlu0 0
    %1486 = vperm.xlu0 %1485, %v1448
    %v1487 = vpop.permute.xlu0 %1486
    %1490 = vset.pattern.permute.xlu0 0
    %1491 = vperm.xlu0 %1490, %v1449
    %v1492 = vpop.permute.xlu0 %1491
    %1495 = vset.pattern.permute.xlu0 0
    %1496 = vperm.xlu0 %1495, %v1450
    %v1497 = vpop.permute.xlu0 %1496
    %1500 = vset.pattern.permute.xlu0 0
    %1501 = vperm.xlu0 %1500, %v1451
    %v1502 = vpop.permute.xlu0 %1501
    %1505 = vset.pattern.permute.xlu0 0
    %1506 = vperm.xlu0 %1505, %v1452
    %v1507 = vpop.permute.xlu0 %1506
    %1510 = vset.pattern.permute.xlu0 0
    %1511 = vperm.xlu0 %1510, %v1453
    %v1512 = vpop.permute.xlu0 %1511
    %1515 = vset.pattern.permute.xlu0 0
    %1516 = vperm.xlu0 %1515, %v1454
    %v1517 = vpop.permute.xlu0 %1516
    %1520 = vset.pattern.permute.xlu0 0
    %1521 = vperm.xlu0 %1520, %v1455
    %v1522 = vpop.permute.xlu0 %1521
    %1525 = vset.pattern.permute.xlu0 0
    %1526 = vperm.xlu0 %1525, %v1456
    %v1527 = vpop.permute.xlu0 %1526
    %1530 = vset.pattern.permute.xlu0 0
    %1531 = vperm.xlu0 %1530, %v1457
    %v1532 = vpop.permute.xlu0 %1531
    %1535 = vset.pattern.permute.xlu0 0
    %1536 = vperm.xlu0 %1535, %v1458
    %v1537 = vpop.permute.xlu0 %1536
    %v1539 = vadd.f32 %v1427, %v1462
    %v1540 = vadd.f32 %v1428, %v1467
    %v1541 = vadd.f32 %v1429, %v1472
    %v1542 = vadd.f32 %v1430, %v1477
    %v1543 = vadd.f32 %v1431, %v1482
    %v1544 = vadd.f32 %v1432, %v1487
    %v1545 = vadd.f32 %v1433, %v1492
    %v1546 = vadd.f32 %v1434, %v1497
    %v1547 = vadd.f32 %v1435, %v1502
    %v1548 = vadd.f32 %v1436, %v1507
    %v1549 = vadd.f32 %v1437, %v1512
    %v1550 = vadd.f32 %v1438, %v1517
    %v1551 = vadd.f32 %v1439, %v1522
    %v1552 = vadd.f32 %v1440, %v1527
    %v1553 = vadd.f32 %v1441, %v1532
    %v1554 = vadd.f32 %v1442, %v1537
    %v1555 = vpack.c.bf16 %v1540, %v1539
    %v1556 = vpack.c.bf16 %v1542, %v1541
    %v1557 = vpack.c.bf16 %v1544, %v1543
    %v1558 = vpack.c.bf16 %v1546, %v1545
    %v1559 = vpack.c.bf16 %v1548, %v1547
    %v1560 = vpack.c.bf16 %v1550, %v1549
    %v1561 = vpack.c.bf16 %v1552, %v1551
    %v1562 = vpack.c.bf16 %v1554, %v1553
    %v1571 = vunpack.c.l.b16 %v1555
    %v1572 = vunpack.c.h.b16 %v1555
    %v1573 = vunpack.c.l.b16 %v1556
    %v1574 = vunpack.c.h.b16 %v1556
    %v1575 = vunpack.c.l.b16 %v1557
    %v1576 = vunpack.c.h.b16 %v1557
    %v1577 = vunpack.c.l.b16 %v1558
    %v1578 = vunpack.c.h.b16 %v1558
    %v1579 = vunpack.c.l.b16 %v1559
    %v1580 = vunpack.c.h.b16 %v1559
    %v1581 = vunpack.c.l.b16 %v1560
    %v1582 = vunpack.c.h.b16 %v1560
    %v1583 = vunpack.c.l.b16 %v1561
    %v1584 = vunpack.c.h.b16 %v1561
    %v1585 = vunpack.c.l.b16 %v1562
    %v1586 = vunpack.c.h.b16 %v1562
    %v1587 = vpack.c.b16 %v1571, %v1571
    %v1588 = vpack.c.b16 %v1572, %v1572
    %v1589 = vpack.c.b16 %v1573, %v1573
    %v1590 = vpack.c.b16 %v1574, %v1574
    %v1591 = vpack.c.b16 %v1575, %v1575
    %v1592 = vpack.c.b16 %v1576, %v1576
    %v1593 = vpack.c.b16 %v1577, %v1577
    %v1594 = vpack.c.b16 %v1578, %v1578
    %v1595 = vpack.c.b16 %v1579, %v1579
    %v1596 = vpack.c.b16 %v1580, %v1580
    %v1597 = vpack.c.b16 %v1581, %v1581
    %v1598 = vpack.c.b16 %v1582, %v1582
    %v1599 = vpack.c.b16 %v1583, %v1583
    %v1600 = vpack.c.b16 %v1584, %v1584
    %v1601 = vpack.c.b16 %v1585, %v1585
    %v1602 = vpack.c.b16 %v1586, %v1586
    %vm1619 = vcmask 11264
    %1620 = vst.msk [vmem:[%s5] sm:$0xf] %vm1619, %v1587
    %1621 = vst.msk [vmem:[%s5 + $0x4] sm:$0xf] %vm1619, %v1588
    %1622 = vst.msk [vmem:[%s5 + $0x8] sm:$0xf] %vm1619, %v1589
    %1623 = vst.msk [vmem:[%s5 + $0xc] sm:$0xf] %vm1619, %v1590
    %1624 = vst.msk [vmem:[%s5 + $0x10] sm:$0xf] %vm1619, %v1591
    %1625 = vst.msk [vmem:[%s5 + $0x14] sm:$0xf] %vm1619, %v1592
    %1626 = vst.msk [vmem:[%s5 + $0x18] sm:$0xf] %vm1619, %v1593
    %1627 = vst.msk [vmem:[%s5 + $0x1c] sm:$0xf] %vm1619, %v1594
    %1628 = vst.msk [vmem:[%s5 + $0x20] sm:$0xf] %vm1619, %v1595
    %1629 = vst.msk [vmem:[%s5 + $0x24] sm:$0xf] %vm1619, %v1596
    %1630 = vst.msk [vmem:[%s5 + $0x28] sm:$0xf] %vm1619, %v1597
    %1631 = vst.msk [vmem:[%s5 + $0x2c] sm:$0xf] %vm1619, %v1598
    %1632 = vst.msk [vmem:[%s5 + $0x30] sm:$0xf] %vm1619, %v1599
    %1633 = vst.msk [vmem:[%s5 + $0x34] sm:$0xf] %vm1619, %v1600
    %1634 = vst.msk [vmem:[%s5 + $0x38] sm:$0xf] %vm1619, %v1601
    %1635 = vst.msk [vmem:[%s5 + $0x3c] sm:$0xf] %vm1619, %v1602
  $region29: #{tpu_custom_call.1} parent=0 // pred_fallthru
    _
  // Predicated region
  $region30: #{tpu_custom_call.1} parent=0 // pred_check
    _
  $region31: #{tpu_custom_call.1} parent=0 // pred_check_branch
    %1637 = sbr.rel (0) target = $region33
  $region32: #{tpu_custom_call.1} parent=0 // pred_region
    _
  $region33: #{tpu_custom_call.1} parent=0 // pred_fallthru
    _
  // Predicated region
  $region34: #{tpu_custom_call.1} parent=0 // pred_check
    _
  $region35: #{tpu_custom_call.1} parent=0 // pred_check_branch
    %1639 = sbr.rel (0) target = $region37
  $region36: #{tpu_custom_call.1} parent=0 // pred_region
    _
  $region37: #{tpu_custom_call.1} parent=0 // pred_fallthru
    _

</llo_original>
